<compile_context>
chip_gen: v6e
topology: v6e:2x2x1
jax: 0.10.0
libtpu: 0.0.40
codegen_flags: <defaults>
</compile_context>

<pallas_src>
import functools

import jax
import jax.numpy as jnp
from jax.experimental import pallas as pl
from jax.experimental.pallas import tpu as pltpu


# ----------------------------- small helpers --------------------------------

def _round_up(x, m):
    return ((x + m - 1) // m) * m


def _pick_tile(n, cap, align):
    """Tile size <= cap, multiple of `align`, preferring exact divisors of the
    aligned extent (avoids padded/wasted MXU columns)."""
    n_al = _round_up(n, align)
    if n_al <= cap:
        return n_al
    t = cap - (cap % align)
    best = t
    while t >= align:
        if n_al % t == 0:
            return t
        t -= align
    return best


_VMEM_LIMIT_CACHE = None


def _vmem_limit():
    """Generation-aware scoped-VMEM budget: 3/4 of physical (96 MiB on v5e/v6e,
    48 MiB on v7x); safe 48 MiB fallback if the query is unavailable."""
    global _VMEM_LIMIT_CACHE
    if _VMEM_LIMIT_CACHE is None:
        limit = 48 * 1024 * 1024
        try:
            cap = getattr(pltpu.get_tpu_info(), "vmem_capacity_bytes", None)
            if cap:
                limit = min(int(cap) * 3 // 4, 100 * 1024 * 1024)
        except Exception:
            pass
        _VMEM_LIMIT_CACHE = limit
    return _VMEM_LIMIT_CACHE


def _gelu_tanh(x):
    # tanh-approx GELU: the cubic is cheap VALU work, tanh goes to the EUP slot.
    # Deviates ~1e-3 from torch's exact erf GELU -- acceptable for inference.
    c = 0.7978845608028654  # sqrt(2/pi)
    return 0.5 * x * (1.0 + jnp.tanh(c * (x + 0.044715 * x * x * x)))


# ------------------- fused LN + matmul + bias/GELU/residual ------------------

def _fused_linear_kernel(*refs, nk, ln, ln_eps, use_gelu, use_residual):
    it = iter(refs)
    x_ref, w_ref, b_ref = next(it), next(it), next(it)
    g_ref = next(it) if ln else None
    beta_ref = next(it) if ln else None
    r_ref = next(it) if use_residual else None
    o_ref = next(it)
    xln_ref = next(it) if ln else None
    acc_ref = next(it) if nk > 1 else None

    if ln:
        # LayerNorm over the full K row (wrapper guarantees nk == 1 here), computed
        # once per m-tile (j == 0) into a bf16 scratch and reused for all j tiles.
        @pl.when(pl.program_id(1) == 0)
        def _compute_ln():
            x = x_ref[...].astype(jnp.float32)
            mu = jnp.mean(x, axis=-1, keepdims=True)
            var = jnp.mean(jnp.square(x - mu), axis=-1, keepdims=True)
            xn = (x - mu) * jax.lax.rsqrt(var + ln_eps)
            xn = xn * g_ref[...].astype(jnp.float32) + beta_ref[...].astype(jnp.float32)
            xln_ref[...] = xn.astype(xln_ref.dtype)

        x_in = xln_ref[...]                       # bf16
    else:
        x_in = x_ref[...].astype(jnp.bfloat16)    # bf16 operands for the MXU

    part = jnp.dot(x_in, w_ref[...], preferred_element_type=jnp.float32)

    def _epilogue(y):
        y = y + b_ref[...].astype(jnp.float32)
        if use_gelu:
            y = _gelu_tanh(y)
        if use_residual:
            y = y + r_ref[...].astype(jnp.float32)
        o_ref[...] = y.astype(o_ref.dtype)

    if nk == 1:
        # Direct path: no accumulator scratch, no zero-init / re-read round trip.
        _epilogue(part)
    else:
        @pl.when(pl.program_id(2) == 0)
        def _init():
            acc_ref[...] = part

        @pl.when(pl.program_id(2) != 0)
        def _acc():
            acc_ref[...] += part

        @pl.when(pl.program_id(2) == nk - 1)
        def _finish():
            _epilogue(acc_ref[...])


def fused_linear(x, w, b, *, ln_params=None, ln_eps=1e-6, gelu=False, residual=None,
                 out_dtype=None, tm=512, tn=1024, tk=1024):
    """y = [LN(x)] @ w + b, optionally tanh-GELU'd, optionally + residual.

    x: (M, K) f32/bf16, w: (K, N) f32 (cast to bf16 here), b: (N,), residual: (M, N).
    MXU operands are bf16; accumulation and the epilogue math are f32.
    """
    M, K = x.shape
    N = w.shape[1]
    ln = ln_params is not None
    use_res = residual is not None
    out_dtype = out_dtype or x.dtype

    tm_e = _pick_tile(M, tm, 8)
    tn_e = _pick_tile(N, tn, 128)
    tk_e = K if ln else _pick_tile(K, tk, 128)   # full K row when LN is fused
    Mp = _round_up(M, tm_e)
    Np = _round_up(N, tn_e)
    Kp = K if ln else _round_up(K, tk_e)
    nm, nn, nk = Mp // tm_e, Np // tn_e, Kp // tk_e

    wp = w.astype(jnp.bfloat16)                  # bf16 weights (constant-folded under jit)
    xp = x
    if (Mp, Kp) != (M, K):
        xp = jnp.pad(x, ((0, Mp - M), (0, Kp - K)))
    if (Kp, Np) != (K, N):
        wp = jnp.pad(wp, ((0, Kp - K), (0, Np - N)))
    bp = jnp.pad(b.astype(jnp.float32), (0, Np - N)).reshape(1, Np)

    x_spec = pl.BlockSpec((tm_e, tk_e), lambda i, j, k: (i, k))
    w_spec = pl.BlockSpec((tk_e, tn_e), lambda i, j, k: (k, j))
    b_spec = pl.BlockSpec((1, tn_e), lambda i, j, k: (0, j))
    o_spec = pl.BlockSpec((tm_e, tn_e), lambda i, j, k: (i, j))

    in_specs = [x_spec, w_spec, b_spec]
    operands = [xp, wp, bp]
    if ln:
        g, beta = ln_params
        ln_spec = pl.BlockSpec((1, K), lambda i, j, k: (0, 0))
        in_specs += [ln_spec, ln_spec]
        operands += [g.astype(jnp.float32).reshape(1, K),
                     beta.astype(jnp.float32).reshape(1, K)]
    if use_res:
        rp = residual
        if (Mp, Np) != residual.shape:
            rp = jnp.pad(residual, ((0, Mp - M), (0, Np - N)))
        in_specs.append(o_spec)
        operands.append(rp)

    scratch = []
    if ln:
        scratch.append(pltpu.VMEM((tm_e, K), jnp.bfloat16))   # cached LN(x) tile
    if nk > 1:
        scratch.append(pltpu.VMEM((tm_e, tn_e), jnp.float32))  # f32 accumulator

    # j must stay sequential ("arbitrary") when the LN cache is used so every core
    # sees j == 0 for each of its m-tiles.
    # TODO(synk): on v5e/v6e (128 MiB VMEM) a deeper weight pipeline
    # (pipeline_mode=pl.Buffered(3)) and tm=1024 are affordable; re-derive for v7x.
    semantics = ("parallel", "arbitrary" if ln else "parallel", "arbitrary")

    kernel = functools.partial(_fused_linear_kernel, nk=nk, ln=ln, ln_eps=ln_eps,
                               use_gelu=gelu, use_residual=use_res)
    out = pl.pallas_call(
        kernel,
        out_shape=jax.ShapeDtypeStruct((Mp, Np), out_dtype),
        grid=(nm, nn, nk),
        in_specs=in_specs,
        out_specs=o_spec,
        scratch_shapes=scratch,
        compiler_params=pltpu.CompilerParams(
            dimension_semantics=semantics,
            vmem_limit_bytes=_vmem_limit()),
    )(*operands)
    if (Mp, Np) != (M, N):
        out = out[:M, :N]
    return out


# ---------------------- flash attention (head-batched) -----------------------

def _flash_attn_kernel(q_ref, k_ref, v_ref, o_ref, m_sc, l_sc, acc_sc,
                       *, scale, kv_len, tkv, masked):
    ki = pl.program_id(2)

    @pl.when(ki == 0)
    def _init():
        m_sc[...] = jnp.full(m_sc.shape, -1e30, jnp.float32)
        l_sc[...] = jnp.zeros(l_sc.shape, jnp.float32)
        acc_sc[...] = jnp.zeros(acc_sc.shape, jnp.float32)

    q = q_ref[0]                                   # (H, tq, Dh) bf16
    k = k_ref[0]                                   # (H, tkv, Dh) bf16
    v = v_ref[0]                                   # (H, tkv, Dh) bf16

    # Heads are a leading batch axis -> no 64-lane slicing / relayouts.
    s = jnp.einsum('hqd,hkd->hqk', q, k,
                   preferred_element_type=jnp.float32) * scale   # (H, tq, tkv) f32
    if masked:
        col = ki * tkv + jax.lax.broadcasted_iota(jnp.int32, s.shape, 2)
        s = jnp.where(col < kv_len, s, -1e30)

    m_prev = m_sc[...]
    m_new = jnp.maximum(m_prev, jnp.max(s, axis=-1, keepdims=True))
    alpha = jnp.exp(m_prev - m_new)
    p = jnp.exp(s - m_new)
    l_sc[...] = alpha * l_sc[...] + jnp.sum(p, axis=-1, keepdims=True)
    acc_sc[...] = alpha * acc_sc[...] + jnp.einsum(
        'hqk,hkd->hqd', p.astype(v.dtype), v, preferred_element_type=jnp.float32)
    m_sc[...] = m_new

    @pl.when(ki == pl.num_programs(2) - 1)
    def _finish():
        inv_l = pl.reciprocal(l_sc[...], approx=True)
        o_ref[0] = (acc_sc[...] * inv_l).astype(o_ref.dtype)


def flash_attention(q, k, v, *, scale, out_dtype=None):
    """q, k, v: (B, H, S, Dh) -> (B, S, H*Dh). Flash-blocked over kv; all heads per step."""
    B, H, S, Dh = q.shape
    out_dtype = out_dtype or q.dtype
    t = 256 if S > 256 else _round_up(S, 8)
    Sp = _round_up(S, t)
    if Sp != S:
        pad = ((0, 0), (0, 0), (0, Sp - S), (0, 0))
        q, k, v = jnp.pad(q, pad), jnp.pad(k, pad), jnp.pad(v, pad)
    nq = Sp // t
    nkv = Sp // t

    q_spec = pl.BlockSpec((1, H, t, Dh), lambda b, qi, ki: (b, 0, qi, 0))
    kv_spec = pl.BlockSpec((1, H, t, Dh), lambda b, qi, ki: (b, 0, ki, 0))
    o_spec = pl.BlockSpec((1, H, t, Dh), lambda b, qi, ki: (b, 0, qi, 0))

    out = pl.pallas_call(
        functools.partial(_flash_attn_kernel, scale=scale, kv_len=S, tkv=t,
                          masked=(Sp != S)),
        out_shape=jax.ShapeDtypeStruct((B, H, Sp, Dh), out_dtype),
        grid=(B, nq, nkv),
        in_specs=[q_spec, kv_spec, kv_spec],
        out_specs=o_spec,
        scratch_shapes=[pltpu.VMEM((H, t, 1), jnp.float32),      # running max
                        pltpu.VMEM((H, t, 1), jnp.float32),      # running sum
                        pltpu.VMEM((H, t, Dh), jnp.float32)],    # output accumulator
        compiler_params=pltpu.CompilerParams(
            dimension_semantics=("parallel", "parallel", "arbitrary"),
            vmem_limit_bytes=_vmem_limit()),
    )(q.astype(jnp.bfloat16), k.astype(jnp.bfloat16), v.astype(jnp.bfloat16))

    # (B, H, Sp, Dh) -> (B, S, H*Dh): layout plumbing left to XLA.
    return out[:, :, :S, :].transpose(0, 2, 1, 3).reshape(B, S, H * Dh)


# ------------------------- parameters (synthetic) ---------------------------

def init_params(key, cfg):
    D = cfg["embed_dim"]
    L = cfg["depth"]
    hid = cfg["mlp_ratio"] * D
    ph, pw = cfg["patch_size"]
    keys = iter(jax.random.split(key, 64))

    def nrm(shape, std=0.02):
        return (std * jax.random.normal(next(keys), shape)).astype(jnp.float32)

    params = {
        # Conv2d(1, D, (ph, pw)) expressed as a matmul; flatten order of the real
        # PyTorch weight (D, 1, ph, pw) must match patches.reshape(..., ph*pw).
        "patch_w": nrm((ph * pw, D)),
        "patch_b": jnp.zeros((D,), jnp.float32),
        "cls_token": nrm((1, 1, D)),
        "dist_token": nrm((1, 1, D)),
        "pos_embed": nrm((1, cfg["seq_len"], D)),
        "norm_g": jnp.ones((D,), jnp.float32),
        "norm_b": jnp.zeros((D,), jnp.float32),
        "head_ln_g": jnp.ones((D,), jnp.float32),
        "head_ln_b": jnp.zeros((D,), jnp.float32),
        "head_w": nrm((D, cfg["label_dim"])),
        "head_b": jnp.zeros((cfg["label_dim"],), jnp.float32),
        "blocks": [],
    }
    for _ in range(L):
        params["blocks"].append({
            "n1_g": jnp.ones((D,), jnp.float32), "n1_b": jnp.zeros((D,), jnp.float32),
            "qkv_w": nrm((D, 3 * D)), "qkv_b": jnp.zeros((3 * D,), jnp.float32),
            "proj_w": nrm((D, D)), "proj_b": jnp.zeros((D,), jnp.float32),
            "n2_g": jnp.ones((D,), jnp.float32), "n2_b": jnp.zeros((D,), jnp.float32),
            "fc1_w": nrm((D, hid)), "fc1_b": jnp.zeros((hid,), jnp.float32),
            "fc2_w": nrm((hid, D)), "fc2_b": jnp.zeros((D,), jnp.float32),
        })
    return params


# ------------------------------ forward pass --------------------------------

def ast_wrapper_forward(X, params, cfg, activation=None):
    B = X.shape[0]
    D = cfg["embed_dim"]
    H = cfg["num_heads"]
    Dh = D // H
    ph, pw = cfg["patch_size"]
    sf, st = cfg["fstride"], cfg["tstride"]

    # ASTWrapper: permute(0,1,3,2)+squeeze(1); ASTModel: unsqueeze(1)+transpose(2,3).
    # The two cancel, so the NCHW conv input is exactly X = (B, 1, n_mel, n_time).
    img = X[:, 0]                                             # (B, F, T)
    Fdim, Tdim = img.shape[1], img.shape[2]
    fd = (Fdim - ph) // sf + 1
    td = (Tdim - pw) // st + 1

    # Patch embedding: Conv2d(1, D, (ph, pw), stride=(sf, st)) as im2col + fused matmul.
    idx_f = jnp.arange(fd)[:, None] * sf + jnp.arange(ph)[None, :]       # (fd, ph)
    idx_t = jnp.arange(td)[:, None] * st + jnp.arange(pw)[None, :]       # (td, pw)
    patches = img[:, idx_f[:, None, :, None], idx_t[None, :, None, :]]   # (B, fd, td, ph, pw)
    patches = patches.reshape(B * fd * td, ph * pw)
    tok = fused_linear(patches, params["patch_w"], params["patch_b"],
                       out_dtype=jnp.bfloat16)
    tok = tok.reshape(B, fd * td, D)                          # (B, num_patches, D)

    # cls + dist tokens, positional embedding (pos_drop is identity at inference).
    cls = jnp.broadcast_to(params["cls_token"], (B, 1, D))
    dist = jnp.broadcast_to(params["dist_token"], (B, 1, D))
    x = jnp.concatenate([cls.astype(jnp.float32), dist.astype(jnp.float32),
                         tok.astype(jnp.float32)], axis=1) + params["pos_embed"]
    S = x.shape[1]
    scale = Dh ** -0.5

    # bf16 residual stream between kernels (f32 accumulation inside every kernel).
    x2 = x.reshape(B * S, D).astype(jnp.bfloat16)
    for blk in params["blocks"]:
        # --- MHSA: x = x + proj(attn(norm1(x))) --- (LN fused into qkv matmul,
        # residual fused into the proj epilogue, flash-blocked head-batched attention)
        qkv = fused_linear(x2, blk["qkv_w"], blk["qkv_b"],
                           ln_params=(blk["n1_g"], blk["n1_b"]), ln_eps=1e-6,
                           out_dtype=jnp.bfloat16)
        qkv5 = qkv.reshape(B, S, 3, H, Dh).transpose(2, 0, 3, 1, 4)      # (3,B,H,S,Dh)
        o = flash_attention(qkv5[0], qkv5[1], qkv5[2], scale=scale,
                            out_dtype=jnp.bfloat16)                      # (B, S, D)
        x2 = fused_linear(o.reshape(B * S, D), blk["proj_w"], blk["proj_b"],
                          residual=x2, out_dtype=jnp.bfloat16)

        # --- MLP: x = x + fc2(gelu(fc1(norm2(x)))) --- (LN+GELU fused into fc1,
        # residual fused into the fc2 epilogue)
        h = fused_linear(x2, blk["fc1_w"], blk["fc1_b"],
                         ln_params=(blk["n2_g"], blk["n2_b"]), ln_eps=1e-6,
                         gelu=True, out_dtype=jnp.bfloat16)
        x2 = fused_linear(h, blk["fc2_w"], blk["fc2_b"], residual=x2,
                          out_dtype=jnp.bfloat16)

    # Final norm is per-token and only the cls/dist tokens are pooled: normalize just
    # those two tokens in plain jnp (micro-op; XLA fuses it).
    cls_dist = x2.reshape(B, S, D)[:, :2, :].astype(jnp.float32)
    mu = jnp.mean(cls_dist, axis=-1, keepdims=True)
    var = jnp.mean(jnp.square(cls_dist - mu), axis=-1, keepdims=True)
    xn = (cls_dist - mu) * jax.lax.rsqrt(var + 1e-6)
    xn = xn * params["norm_g"] + params["norm_b"]
    pooled = (xn[:, 0] + xn[:, 1]) * 0.5                                  # (B, D) f32

    # mlp_head = LayerNorm(eps=1e-5) + Linear, fused into one kernel, f32 logits.
    y = fused_linear(pooled, params["head_w"], params["head_b"],
                     ln_params=(params["head_ln_g"], params["head_ln_b"]),
                     ln_eps=1e-5, out_dtype=jnp.float32)

    # ASTWrapper optional activation (default None -> identity).
    if activation is not None:
        y = activation(y)
    return y


# ----------------------------------- main ------------------------------------

if __name__ == "__main__":
    # Small AST-like config (down-scaled from base384 / fstride=tstride=10, 128x1024 input)
    cfg = dict(
        embed_dim=32, num_heads=4, depth=2, mlp_ratio=4,
        patch_size=(8, 8), fstride=4, tstride=4,
        input_fdim=16, input_tdim=16, label_dim=2,
    )
    ph, pw = cfg["patch_size"]
    fd = (cfg["input_fdim"] - ph) // cfg["fstride"] + 1
    td = (cfg["input_tdim"] - pw) // cfg["tstride"] + 1
    cfg["seq_len"] = fd * td + 2  # + cls + dist tokens

    key = jax.random.PRNGKey(0)
    kx, kp = jax.random.split(key)
    params = init_params(kp, cfg)

    # X: (batch, 1, n_mel_bands, n_time_frames)
    X = jax.random.normal(kx, (2, 1, cfg["input_fdim"], cfg["input_tdim"]), jnp.float32)

    fwd = jax.jit(lambda inp: ast_wrapper_forward(inp, params, cfg, activation=None))
    out = fwd(X)
    jax.block_until_ready(out)
    assert out.shape == (2, cfg["label_dim"]), out.shape
    print("KERNEL_OK")
</pallas_src>

<mosaic_0001>
module attributes {stable_mosaic.version = 11 : i64} {
  func.func @_fused_linear_kernel(%arg0: i32, %arg1: i32, %arg2: i32, %arg3: memref<24x128xf32, #tpu.memory_space<vmem>>, %arg4: memref<128x128xbf16, #tpu.memory_space<vmem>>, %arg5: memref<1x128xf32, #tpu.memory_space<vmem>>, %arg6: memref<24x128xbf16, #tpu.memory_space<vmem>>) attributes {dimension_semantics = [#tpu.dimension_semantics<parallel>, #tpu.dimension_semantics<parallel>, #tpu.dimension_semantics<arbitrary>], iteration_bounds = array<i64: 1, 1, 1>, scalar_prefetch = 0 : i64, scratch_operands = 0 : i64, tpu.core_type = #tpu.core_type<tc>, window_params = [{transform_indices = @transform_0, window_bounds = array<i64: 24, 128>}, {transform_indices = @transform_1, window_bounds = array<i64: 128, 128>}, {transform_indices = @transform_2, window_bounds = array<i64: 1, 128>}, {transform_indices = @transform_3, window_bounds = array<i64: 24, 128>}]} {
    %c0 = arith.constant 0 : index
    %c0_0 = arith.constant 0 : index
    %0 = vector.load %arg3[%c0, %c0_0] : memref<24x128xf32, #tpu.memory_space<vmem>>, vector<24x128xf32>
    %1 = arith.truncf %0 : vector<24x128xf32> to vector<24x128xbf16>
    %c0_1 = arith.constant 0 : index
    %c0_2 = arith.constant 0 : index
    %2 = vector.load %arg4[%c0_1, %c0_2] : memref<128x128xbf16, #tpu.memory_space<vmem>>, vector<128x128xbf16>
    %cst = arith.constant dense<0.000000e+00> : vector<24x128xf32>
    %3 = tpu.matmul %1, %2, %cst {dimension_numbers = #tpu.dot_dimension_numbers<[1], [0], [0], [1], [0, 0, 1, 1], [], []>} : vector<24x128xbf16>, vector<128x128xbf16>, vector<24x128xf32> -> vector<24x128xf32>
    %c0_3 = arith.constant 0 : index
    %c0_4 = arith.constant 0 : index
    %4 = vector.load %arg5[%c0_3, %c0_4] : memref<1x128xf32, #tpu.memory_space<vmem>>, vector<1x128xf32>
    %5 = vector.broadcast %4 : vector<1x128xf32> to vector<24x128xf32>
    %6 = arith.addf %3, %5 : vector<24x128xf32>
    %7 = arith.truncf %6 : vector<24x128xf32> to vector<24x128xbf16>
    %c0_5 = arith.constant 0 : index
    %c0_6 = arith.constant 0 : index
    %8 = vector.load %arg6[%c0_5, %c0_6] : memref<24x128xbf16, #tpu.memory_space<vmem>>, vector<24x128xbf16>
    tpu.vector_store %arg6[%c0_5, %c0_6], %7 {strides = array<i32>} : memref<24x128xbf16, #tpu.memory_space<vmem>>, vector<24x128xbf16>,
    return
  }
  func.func @transform_0(%arg0: i32, %arg1: i32, %arg2: i32) -> (i32, i32) {
    %c0_i32 = arith.constant 0 : i32
    return %arg0, %arg2 : i32, i32
  }
  func.func @transform_1(%arg0: i32, %arg1: i32, %arg2: i32) -> (i32, i32) {
    %c0_i32 = arith.constant 0 : i32
    return %arg2, %arg1 : i32, i32
  }
  func.func @transform_2(%arg0: i32, %arg1: i32, %arg2: i32) -> (i32, i32) {
    %c0_i32 = arith.constant 0 : i32
    %c0_i32_0 = arith.constant 0 : i32
    return %c0_i32, %arg1 : i32, i32
  }
  func.func @transform_3(%arg0: i32, %arg1: i32, %arg2: i32) -> (i32, i32) {
    %c0_i32 = arith.constant 0 : i32
    return %arg0, %arg1 : i32, i32
  }
}

module attributes {stable_mosaic.version = 11 : i64} {
  func.func @_fused_linear_kernel(%arg0: i32, %arg1: i32, %arg2: i32, %arg3: memref<24x32xbf16, #tpu.memory_space<vmem>>, %arg4: memref<32x128xbf16, #tpu.memory_space<vmem>>, %arg5: memref<1x128xf32, #tpu.memory_space<vmem>>, %arg6: memref<1x32xf32, #tpu.memory_space<vmem>>, %arg7: memref<1x32xf32, #tpu.memory_space<vmem>>, %arg8: memref<24x128xbf16, #tpu.memory_space<vmem>>, %arg9: memref<24x32xbf16, #tpu.memory_space<vmem>>) attributes {dimension_semantics = [#tpu.dimension_semantics<parallel>, #tpu.dimension_semantics<arbitrary>, #tpu.dimension_semantics<arbitrary>], iteration_bounds = array<i64: 1, 1, 1>, scalar_prefetch = 0 : i64, scratch_operands = 1 : i64, tpu.core_type = #tpu.core_type<tc>, window_params = [{transform_indices = @transform_0, window_bounds = array<i64: 24, 32>}, {transform_indices = @transform_1, window_bounds = array<i64: 32, 128>}, {transform_indices = @transform_2, window_bounds = array<i64: 1, 128>}, {pipeline_mode = #tpu.pipeline_mode<synchronous>, transform_indices = @transform_3, window_bounds = array<i64: 1, 32>}, {pipeline_mode = #tpu.pipeline_mode<synchronous>, transform_indices = @transform_4, window_bounds = array<i64: 1, 32>}, {transform_indices = @transform_5, window_bounds = array<i64: 24, 128>}]} {
    %c0_i32 = arith.constant 0 : i32
    %0 = arith.cmpi eq, %arg1, %c0_i32 : i32
    %1 = arith.extui %0 : i1 to i32
    %c0_i32_0 = arith.constant 0 : i32
    %2 = arith.cmpi ne, %1, %c0_i32_0 : i32
    scf.if %2 {
      %c0_8 = arith.constant 0 : index
      %c0_9 = arith.constant 0 : index
      %11 = vector.load %arg3[%c0_8, %c0_9] : memref<24x32xbf16, #tpu.memory_space<vmem>>, vector<24x32xbf16>
      %12 = arith.extf %11 : vector<24x32xbf16> to vector<24x32xf32>
      %cst_10 = arith.constant dense<0.000000e+00> : vector<24xf32>
      %13 = vector.multi_reduction <add>, %12, %cst_10 [1] : vector<24x32xf32> to vector<24xf32>
      %14 = vector.shape_cast %13 : vector<24xf32> to vector<24x1xf32>
      %cst_11 = arith.constant 3.200000e+01 : f32
      %15 = vector.broadcast %cst_11 : f32 to vector<24x1xf32>
      %16 = arith.divf %14, %15 : vector<24x1xf32>
      %17 = vector.broadcast %16 : vector<24x1xf32> to vector<24x32xf32>
      %18 = arith.subf %12, %17 : vector<24x32xf32>
      %19 = arith.mulf %18, %18 : vector<24x32xf32>
      %cst_12 = arith.constant dense<0.000000e+00> : vector<24xf32>
      %20 = vector.multi_reduction <add>, %19, %cst_12 [1] : vector<24x32xf32> to vector<24xf32>
      %21 = vector.shape_cast %20 : vector<24xf32> to vector<24x1xf32>
      %cst_13 = arith.constant 3.200000e+01 : f32
      %22 = vector.broadcast %cst_13 : f32 to vector<24x1xf32>
      %23 = arith.divf %21, %22 : vector<24x1xf32>
      %24 = vector.broadcast %16 : vector<24x1xf32> to vector<24x32xf32>
      %25 = arith.subf %12, %24 : vector<24x32xf32>
      %cst_14 = arith.constant 9.99999997E-7 : f32
      %26 = vector.broadcast %cst_14 : f32 to vector<24x1xf32>
      %27 = arith.addf %23, %26 : vector<24x1xf32>
      %28 = math.rsqrt %27 : vector<24x1xf32>
      %29 = vector.broadcast %28 : vector<24x1xf32> to vector<24x32xf32>
      %30 = arith.mulf %25, %29 : vector<24x32xf32>
      %c0_15 = arith.constant 0 : index
      %c0_16 = arith.constant 0 : index
      %31 = vector.load %arg6[%c0_15, %c0_16] : memref<1x32xf32, #tpu.memory_space<vmem>>, vector<1x32xf32>
      %32 = vector.broadcast %31 : vector<1x32xf32> to vector<24x32xf32>
      %33 = arith.mulf %30, %32 : vector<24x32xf32>
      %c0_17 = arith.constant 0 : index
      %c0_18 = arith.constant 0 : index
      %34 = vector.load %arg7[%c0_17, %c0_18] : memref<1x32xf32, #tpu.memory_space<vmem>>, vector<1x32xf32>
      %35 = vector.broadcast %34 : vector<1x32xf32> to vector<24x32xf32>
      %36 = arith.addf %33, %35 : vector<24x32xf32>
      %37 = arith.truncf %36 : vector<24x32xf32> to vector<24x32xbf16>
      %c0_19 = arith.constant 0 : index
      %c0_20 = arith.constant 0 : index
      %38 = vector.load %arg9[%c0_19, %c0_20] : memref<24x32xbf16, #tpu.memory_space<vmem>>, vector<24x32xbf16>
      tpu.vector_store %arg9[%c0_19, %c0_20], %37 {strides = array<i32>} : memref<24x32xbf16, #tpu.memory_space<vmem>>, vector<24x32xbf16>,
    } else {
    }
    %c0 = arith.constant 0 : index
    %c0_1 = arith.constant 0 : index
    %3 = vector.load %arg9[%c0, %c0_1] : memref<24x32xbf16, #tpu.memory_space<vmem>>, vector<24x32xbf16>
    %c0_2 = arith.constant 0 : index
    %c0_3 = arith.constant 0 : index
    %4 = vector.load %arg4[%c0_2, %c0_3] : memref<32x128xbf16, #tpu.memory_space<vmem>>, vector<32x128xbf16>
    %cst = arith.constant dense<0.000000e+00> : vector<24x128xf32>
    %5 = tpu.matmul %3, %4, %cst {dimension_numbers = #tpu.dot_dimension_numbers<[1], [0], [0], [1], [0, 0, 1, 1], [], []>} : vector<24x32xbf16>, vector<32x128xbf16>, vector<24x128xf32> -> vector<24x128xf32>
    %c0_4 = arith.constant 0 : index
    %c0_5 = arith.constant 0 : index
    %6 = vector.load %arg5[%c0_4, %c0_5] : memref<1x128xf32, #tpu.memory_space<vmem>>, vector<1x128xf32>
    %7 = vector.broadcast %6 : vector<1x128xf32> to vector<24x128xf32>
    %8 = arith.addf %5, %7 : vector<24x128xf32>
    %9 = arith.truncf %8 : vector<24x128xf32> to vector<24x128xbf16>
    %c0_6 = arith.constant 0 : index
    %c0_7 = arith.constant 0 : index
    %10 = vector.load %arg8[%c0_6, %c0_7] : memref<24x128xbf16, #tpu.memory_space<vmem>>, vector<24x128xbf16>
    tpu.vector_store %arg8[%c0_6, %c0_7], %9 {strides = array<i32>} : memref<24x128xbf16, #tpu.memory_space<vmem>>, vector<24x128xbf16>,
    return
  }
  func.func @transform_0(%arg0: i32, %arg1: i32, %arg2: i32) -> (i32, i32) {
    %c0_i32 = arith.constant 0 : i32
    return %arg0, %arg2 : i32, i32
  }
  func.func @transform_1(%arg0: i32, %arg1: i32, %arg2: i32) -> (i32, i32) {
    %c0_i32 = arith.constant 0 : i32
    return %arg2, %arg1 : i32, i32
  }
  func.func @transform_2(%arg0: i32, %arg1: i32, %arg2: i32) -> (i32, i32) {
    %c0_i32 = arith.constant 0 : i32
    %c0_i32_0 = arith.constant 0 : i32
    return %c0_i32, %arg1 : i32, i32
  }
  func.func @transform_3(%arg0: i32, %arg1: i32, %arg2: i32) -> (i32, i32) {
    %c0_i32 = arith.constant 0 : i32
    %c0_i32_0 = arith.constant 0 : i32
    %c0_i32_1 = arith.constant 0 : i32
    return %c0_i32, %c0_i32_0 : i32, i32
  }
  func.func @transform_4(%arg0: i32, %arg1: i32, %arg2: i32) -> (i32, i32) {
    %c0_i32 = arith.constant 0 : i32
    %c0_i32_0 = arith.constant 0 : i32
    %c0_i32_1 = arith.constant 0 : i32
    return %c0_i32, %c0_i32_0 : i32, i32
  }
  func.func @transform_5(%arg0: i32, %arg1: i32, %arg2: i32) -> (i32, i32) {
    %c0_i32 = arith.constant 0 : i32
    return %arg0, %arg1 : i32, i32
  }
}

module attributes {stable_mosaic.version = 11 : i64} {
  func.func @_fused_linear_kernel(%arg0: i32, %arg1: i32, %arg2: i32, %arg3: memref<24x128xbf16, #tpu.memory_space<vmem>>, %arg4: memref<128x128xbf16, #tpu.memory_space<vmem>>, %arg5: memref<1x128xf32, #tpu.memory_space<vmem>>, %arg6: memref<24x128xbf16, #tpu.memory_space<vmem>>, %arg7: memref<24x128xbf16, #tpu.memory_space<vmem>>) attributes {dimension_semantics = [#tpu.dimension_semantics<parallel>, #tpu.dimension_semantics<parallel>, #tpu.dimension_semantics<arbitrary>], iteration_bounds = array<i64: 1, 1, 1>, scalar_prefetch = 0 : i64, scratch_operands = 0 : i64, tpu.core_type = #tpu.core_type<tc>, window_params = [{transform_indices = @transform_0, window_bounds = array<i64: 24, 128>}, {transform_indices = @transform_1, window_bounds = array<i64: 128, 128>}, {transform_indices = @transform_2, window_bounds = array<i64: 1, 128>}, {transform_indices = @transform_3, window_bounds = array<i64: 24, 128>}, {transform_indices = @transform_4, window_bounds = array<i64: 24, 128>}]} {
    %c0 = arith.constant 0 : index
    %c0_0 = arith.constant 0 : index
    %0 = vector.load %arg3[%c0, %c0_0] : memref<24x128xbf16, #tpu.memory_space<vmem>>, vector<24x128xbf16>
    %c0_1 = arith.constant 0 : index
    %c0_2 = arith.constant 0 : index
    %1 = vector.load %arg4[%c0_1, %c0_2] : memref<128x128xbf16, #tpu.memory_space<vmem>>, vector<128x128xbf16>
    %cst = arith.constant dense<0.000000e+00> : vector<24x128xf32>
    %2 = tpu.matmul %0, %1, %cst {dimension_numbers = #tpu.dot_dimension_numbers<[1], [0], [0], [1], [0, 0, 1, 1], [], []>} : vector<24x128xbf16>, vector<128x128xbf16>, vector<24x128xf32> -> vector<24x128xf32>
    %c0_3 = arith.constant 0 : index
    %c0_4 = arith.constant 0 : index
    %3 = vector.load %arg5[%c0_3, %c0_4] : memref<1x128xf32, #tpu.memory_space<vmem>>, vector<1x128xf32>
    %4 = vector.broadcast %3 : vector<1x128xf32> to vector<24x128xf32>
    %5 = arith.addf %2, %4 : vector<24x128xf32>
    %c0_5 = arith.constant 0 : index
    %c0_6 = arith.constant 0 : index
    %6 = vector.load %arg6[%c0_5, %c0_6] : memref<24x128xbf16, #tpu.memory_space<vmem>>, vector<24x128xbf16>
    %7 = arith.extf %6 : vector<24x128xbf16> to vector<24x128xf32>
    %8 = arith.addf %5, %7 : vector<24x128xf32>
    %9 = arith.truncf %8 : vector<24x128xf32> to vector<24x128xbf16>
    %c0_7 = arith.constant 0 : index
    %c0_8 = arith.constant 0 : index
    %10 = vector.load %arg7[%c0_7, %c0_8] : memref<24x128xbf16, #tpu.memory_space<vmem>>, vector<24x128xbf16>
    tpu.vector_store %arg7[%c0_7, %c0_8], %9 {strides = array<i32>} : memref<24x128xbf16, #tpu.memory_space<vmem>>, vector<24x128xbf16>,
    return
  }
  func.func @transform_0(%arg0: i32, %arg1: i32, %arg2: i32) -> (i32, i32) {
    %c0_i32 = arith.constant 0 : i32
    return %arg0, %arg2 : i32, i32
  }
  func.func @transform_1(%arg0: i32, %arg1: i32, %arg2: i32) -> (i32, i32) {
    %c0_i32 = arith.constant 0 : i32
    return %arg2, %arg1 : i32, i32
  }
  func.func @transform_2(%arg0: i32, %arg1: i32, %arg2: i32) -> (i32, i32) {
    %c0_i32 = arith.constant 0 : i32
    %c0_i32_0 = arith.constant 0 : i32
    return %c0_i32, %arg1 : i32, i32
  }
  func.func @transform_3(%arg0: i32, %arg1: i32, %arg2: i32) -> (i32, i32) {
    %c0_i32 = arith.constant 0 : i32
    return %arg0, %arg1 : i32, i32
  }
  func.func @transform_4(%arg0: i32, %arg1: i32, %arg2: i32) -> (i32, i32) {
    %c0_i32 = arith.constant 0 : i32
    return %arg0, %arg1 : i32, i32
  }
}

module attributes {stable_mosaic.version = 11 : i64} {
  func.func @_flash_attn_kernel(%arg0: i32, %arg1: i32, %arg2: i32, %arg3: memref<1x4x16x8xbf16, #tpu.memory_space<vmem>>, %arg4: memref<1x4x16x8xbf16, #tpu.memory_space<vmem>>, %arg5: memref<1x4x16x8xbf16, #tpu.memory_space<vmem>>, %arg6: memref<1x4x16x8xbf16, #tpu.memory_space<vmem>>, %arg7: memref<4x16x1xf32, #tpu.memory_space<vmem>>, %arg8: memref<4x16x1xf32, #tpu.memory_space<vmem>>, %arg9: memref<4x16x8xf32, #tpu.memory_space<vmem>>) attributes {dimension_semantics = [#tpu.dimension_semantics<parallel>, #tpu.dimension_semantics<parallel>, #tpu.dimension_semantics<arbitrary>], iteration_bounds = array<i64: 2, 1, 1>, scalar_prefetch = 0 : i64, scratch_operands = 3 : i64, tpu.core_type = #tpu.core_type<tc>, window_params = [{transform_indices = @transform_0, window_bounds = array<i64: 1, 4, 16, 8>}, {transform_indices = @transform_1, window_bounds = array<i64: 1, 4, 16, 8>}, {transform_indices = @transform_2, window_bounds = array<i64: 1, 4, 16, 8>}, {transform_indices = @transform_3, window_bounds = array<i64: 1, 4, 16, 8>}]} {
    %c0_i32 = arith.constant 0 : i32
    %0 = arith.cmpi eq, %arg2, %c0_i32 : i32
    %1 = arith.extui %0 : i1 to i32
    %c0_i32_0 = arith.constant 0 : i32
    %2 = arith.cmpi ne, %1, %c0_i32_0 : i32
    scf.if %2 {
      %cst_37 = arith.constant -1.000000e+30 : f32
      %46 = vector.broadcast %cst_37 : f32 to vector<4x16x1xf32>
      %c0_38 = arith.constant 0 : index
      %c0_39 = arith.constant 0 : index
      %c0_40 = arith.constant 0 : index
      %47 = vector.load %arg7[%c0_38, %c0_39, %c0_40] : memref<4x16x1xf32, #tpu.memory_space<vmem>>, vector<4x16x1xf32>
      tpu.vector_store %arg7[%c0_38, %c0_39, %c0_40], %46 {strides = array<i32>} : memref<4x16x1xf32, #tpu.memory_space<vmem>>, vector<4x16x1xf32>,
      %cst_41 = arith.constant 0.000000e+00 : f32
      %48 = vector.broadcast %cst_41 : f32 to vector<4x16x1xf32>
      %c0_42 = arith.constant 0 : index
      %c0_43 = arith.constant 0 : index
      %c0_44 = arith.constant 0 : index
      %49 = vector.load %arg8[%c0_42, %c0_43, %c0_44] : memref<4x16x1xf32, #tpu.memory_space<vmem>>, vector<4x16x1xf32>
      tpu.vector_store %arg8[%c0_42, %c0_43, %c0_44], %48 {strides = array<i32>} : memref<4x16x1xf32, #tpu.memory_space<vmem>>, vector<4x16x1xf32>,
      %cst_45 = arith.constant 0.000000e+00 : f32
      %50 = vector.broadcast %cst_45 : f32 to vector<4x16x8xf32>
      %c0_46 = arith.constant 0 : index
      %c0_47 = arith.constant 0 : index
      %c0_48 = arith.constant 0 : index
      %51 = vector.load %arg9[%c0_46, %c0_47, %c0_48] : memref<4x16x8xf32, #tpu.memory_space<vmem>>, vector<4x16x8xf32>
      tpu.vector_store %arg9[%c0_46, %c0_47, %c0_48], %50 {strides = array<i32>} : memref<4x16x8xf32, #tpu.memory_space<vmem>>, vector<4x16x8xf32>,
    } else {
    }
    %c0 = arith.constant 0 : index
    %c0_1 = arith.constant 0 : index
    %c0_2 = arith.constant 0 : index
    %c0_3 = arith.constant 0 : index
    %3 = vector.load %arg3[%c0, %c0_1, %c0_2, %c0_3] : memref<1x4x16x8xbf16, #tpu.memory_space<vmem>>, vector<1x4x16x8xbf16>
    %4 = vector.shape_cast %3 : vector<1x4x16x8xbf16> to vector<4x16x8xbf16>
    %c0_4 = arith.constant 0 : index
    %c0_5 = arith.constant 0 : index
    %c0_6 = arith.constant 0 : index
    %c0_7 = arith.constant 0 : index
    %5 = vector.load %arg4[%c0_4, %c0_5, %c0_6, %c0_7] : memref<1x4x16x8xbf16, #tpu.memory_space<vmem>>, vector<1x4x16x8xbf16>
    %6 = vector.shape_cast %5 : vector<1x4x16x8xbf16> to vector<4x16x8xbf16>
    %c0_8 = arith.constant 0 : index
    %c0_9 = arith.constant 0 : index
    %c0_10 = arith.constant 0 : index
    %c0_11 = arith.constant 0 : index
    %7 = vector.load %arg5[%c0_8, %c0_9, %c0_10, %c0_11] : memref<1x4x16x8xbf16, #tpu.memory_space<vmem>>, vector<1x4x16x8xbf16>
    %8 = vector.shape_cast %7 : vector<1x4x16x8xbf16> to vector<4x16x8xbf16>
    "tpu.trace_start"() <{level = 10 : i32, message = "hqd,hkd->hqk"}> : () -> ()
    %cst = arith.constant dense<0.000000e+00> : vector<4x16x16xf32>
    %9 = tpu.matmul %4, %6, %cst {dimension_numbers = #tpu.dot_dimension_numbers<[2], [2], [1], [1], [0, 0, 0, 1, 1, 1], [0], [0]>} : vector<4x16x8xbf16>, vector<4x16x8xbf16>, vector<4x16x16xf32> -> vector<4x16x16xf32>
    "tpu.trace_stop"() : () -> ()
    %cst_12 = arith.constant 0.353553385 : f32
    %10 = vector.broadcast %cst_12 : f32 to vector<4x16x16xf32>
    %11 = arith.mulf %9, %10 : vector<4x16x16xf32>
    %c16_i32 = arith.constant 16 : i32
    %12 = arith.muli %arg2, %c16_i32 : i32
    %13 = tpu.iota {dimensions = array<i32: 2>} : vector<4x16x16xi32>
    %14 = vector.broadcast %12 : i32 to vector<4x16x16xi32>
    %15 = arith.addi %14, %13 : vector<4x16x16xi32>
    %c11_i32 = arith.constant 11 : i32
    %16 = vector.broadcast %c11_i32 : i32 to vector<4x16x16xi32>
    %17 = arith.cmpi slt, %15, %16 : vector<4x16x16xi32>
    %cst_13 = arith.constant -1.000000e+30 : f32
    %18 = vector.broadcast %cst_13 : f32 to vector<4x16x16xf32>
    %19 = arith.select %17, %11, %18 : vector<4x16x16xi1>, vector<4x16x16xf32>
    %c0_14 = arith.constant 0 : index
    %c0_15 = arith.constant 0 : index
    %c0_16 = arith.constant 0 : index
    %20 = vector.load %arg7[%c0_14, %c0_15, %c0_16] : memref<4x16x1xf32, #tpu.memory_space<vmem>>, vector<4x16x1xf32>
    %cst_17 = arith.constant dense<0xFF800000> : vector<4x16xf32>
    %21 = vector.multi_reduction <maximumf>, %19, %cst_17 [2] : vector<4x16x16xf32> to vector<4x16xf32>
    %22 = vector.shape_cast %21 : vector<4x16xf32> to vector<4x16x1xf32>
    %23 = arith.maximumf %20, %22 : vector<4x16x1xf32>
    %24 = arith.subf %20, %23 : vector<4x16x1xf32>
    %25 = math.exp %24 : vector<4x16x1xf32>
    %26 = vector.broadcast %23 : vector<4x16x1xf32> to vector<4x16x16xf32>
    %27 = arith.subf %19, %26 : vector<4x16x16xf32>
    %28 = math.exp %27 : vector<4x16x16xf32>
    %c0_18 = arith.constant 0 : index
    %c0_19 = arith.constant 0 : index
    %c0_20 = arith.constant 0 : index
    %29 = vector.load %arg8[%c0_18, %c0_19, %c0_20] : memref<4x16x1xf32, #tpu.memory_space<vmem>>, vector<4x16x1xf32>
    %30 = arith.mulf %25, %29 : vector<4x16x1xf32>
    %cst_21 = arith.constant dense<0.000000e+00> : vector<4x16xf32>
    %31 = vector.multi_reduction <add>, %28, %cst_21 [2] : vector<4x16x16xf32> to vector<4x16xf32>
    %32 = vector.shape_cast %31 : vector<4x16xf32> to vector<4x16x1xf32>
    %33 = arith.addf %30, %32 : vector<4x16x1xf32>
    %c0_22 = arith.constant 0 : index
    %c0_23 = arith.constant 0 : index
    %c0_24 = arith.constant 0 : index
    %34 = vector.load %arg8[%c0_22, %c0_23, %c0_24] : memref<4x16x1xf32, #tpu.memory_space<vmem>>, vector<4x16x1xf32>
    tpu.vector_store %arg8[%c0_22, %c0_23, %c0_24], %33 {strides = array<i32>} : memref<4x16x1xf32, #tpu.memory_space<vmem>>, vector<4x16x1xf32>,
    %c0_25 = arith.constant 0 : index
    %c0_26 = arith.constant 0 : index
    %c0_27 = arith.constant 0 : index
    %35 = vector.load %arg9[%c0_25, %c0_26, %c0_27] : memref<4x16x8xf32, #tpu.memory_space<vmem>>, vector<4x16x8xf32>
    %36 = vector.broadcast %25 : vector<4x16x1xf32> to vector<4x16x8xf32>
    %37 = arith.mulf %36, %35 : vector<4x16x8xf32>
    %38 = arith.truncf %28 : vector<4x16x16xf32> to vector<4x16x16xbf16>
    "tpu.trace_start"() <{level = 10 : i32, message = "hqk,hkd->hqd"}> : () -> ()
    %cst_28 = arith.constant dense<0.000000e+00> : vector<4x16x8xf32>
    %39 = tpu.matmul %38, %8, %cst_28 {dimension_numbers = #tpu.dot_dimension_numbers<[2], [1], [1], [2], [0, 0, 0, 1, 1, 2], [0], [0]>} : vector<4x16x16xbf16>, vector<4x16x8xbf16>, vector<4x16x8xf32> -> vector<4x16x8xf32>
    "tpu.trace_stop"() : () -> ()
    %40 = arith.addf %37, %39 : vector<4x16x8xf32>
    %c0_29 = arith.constant 0 : index
    %c0_30 = arith.constant 0 : index
    %c0_31 = arith.constant 0 : index
    %41 = vector.load %arg9[%c0_29, %c0_30, %c0_31] : memref<4x16x8xf32, #tpu.memory_space<vmem>>, vector<4x16x8xf32>
    tpu.vector_store %arg9[%c0_29, %c0_30, %c0_31], %40 {strides = array<i32>} : memref<4x16x8xf32, #tpu.memory_space<vmem>>, vector<4x16x8xf32>,
    %c0_32 = arith.constant 0 : index
    %c0_33 = arith.constant 0 : index
    %c0_34 = arith.constant 0 : index
    %42 = vector.load %arg7[%c0_32, %c0_33, %c0_34] : memref<4x16x1xf32, #tpu.memory_space<vmem>>, vector<4x16x1xf32>
    tpu.vector_store %arg7[%c0_32, %c0_33, %c0_34], %23 {strides = array<i32>} : memref<4x16x1xf32, #tpu.memory_space<vmem>>, vector<4x16x1xf32>,
    %c0_i32_35 = arith.constant 0 : i32
    %43 = arith.cmpi eq, %arg2, %c0_i32_35 : i32
    %44 = arith.extui %43 : i1 to i32
    %c0_i32_36 = arith.constant 0 : i32
    %45 = arith.cmpi ne, %44, %c0_i32_36 : i32
    scf.if %45 {
      %c0_37 = arith.constant 0 : index
      %c0_38 = arith.constant 0 : index
      %c0_39 = arith.constant 0 : index
      %46 = vector.load %arg8[%c0_37, %c0_38, %c0_39] : memref<4x16x1xf32, #tpu.memory_space<vmem>>, vector<4x16x1xf32>
      %47 = tpu.reciprocal %46 {approx = true} : vector<4x16x1xf32> -> vector<4x16x1xf32>
      %c0_40 = arith.constant 0 : index
      %c0_41 = arith.constant 0 : index
      %c0_42 = arith.constant 0 : index
      %48 = vector.load %arg9[%c0_40, %c0_41, %c0_42] : memref<4x16x8xf32, #tpu.memory_space<vmem>>, vector<4x16x8xf32>
      %49 = vector.broadcast %47 : vector<4x16x1xf32> to vector<4x16x8xf32>
      %50 = arith.mulf %48, %49 : vector<4x16x8xf32>
      %51 = arith.truncf %50 : vector<4x16x8xf32> to vector<4x16x8xbf16>
      %c0_43 = arith.constant 0 : index
      %c0_44 = arith.constant 0 : index
      %c0_45 = arith.constant 0 : index
      %c0_46 = arith.constant 0 : index
      %52 = vector.load %arg6[%c0_43, %c0_44, %c0_45, %c0_46] : memref<1x4x16x8xbf16, #tpu.memory_space<vmem>>, vector<1x4x16x8xbf16>
      %53 = vector.shape_cast %52 : vector<1x4x16x8xbf16> to vector<4x16x8xbf16>
      %54 = vector.shape_cast %51 : vector<4x16x8xbf16> to vector<1x4x16x8xbf16>
      tpu.vector_store %arg6[%c0_43, %c0_44, %c0_45, %c0_46], %54 {strides = array<i32>} : memref<1x4x16x8xbf16, #tpu.memory_space<vmem>>, vector<1x4x16x8xbf16>,
    } else {
    }
    return
  }
  func.func @transform_0(%arg0: i32, %arg1: i32, %arg2: i32) -> (i32, i32, i32, i32) {
    %c0_i32 = arith.constant 0 : i32
    %c0_i32_0 = arith.constant 0 : i32
    %c0_i32_1 = arith.constant 0 : i32
    return %arg0, %c0_i32, %arg1, %c0_i32_0 : i32, i32, i32, i32
  }
  func.func @transform_1(%arg0: i32, %arg1: i32, %arg2: i32) -> (i32, i32, i32, i32) {
    %c0_i32 = arith.constant 0 : i32
    %c0_i32_0 = arith.constant 0 : i32
    %c0_i32_1 = arith.constant 0 : i32
    return %arg0, %c0_i32, %arg2, %c0_i32_0 : i32, i32, i32, i32
  }
  func.func @transform_2(%arg0: i32, %arg1: i32, %arg2: i32) -> (i32, i32, i32, i32) {
    %c0_i32 = arith.constant 0 : i32
    %c0_i32_0 = arith.constant 0 : i32
    %c0_i32_1 = arith.constant 0 : i32
    return %arg0, %c0_i32, %arg2, %c0_i32_0 : i32, i32, i32, i32
  }
  func.func @transform_3(%arg0: i32, %arg1: i32, %arg2: i32) -> (i32, i32, i32, i32) {
    %c0_i32 = arith.constant 0 : i32
    %c0_i32_0 = arith.constant 0 : i32
    %c0_i32_1 = arith.constant 0 : i32
    return %arg0, %c0_i32, %arg1, %c0_i32_0 : i32, i32, i32, i32
  }
}

module attributes {stable_mosaic.version = 11 : i64} {
  func.func @_fused_linear_kernel(%arg0: i32, %arg1: i32, %arg2: i32, %arg3: memref<24x32xbf16, #tpu.memory_space<vmem>>, %arg4: memref<32x128xbf16, #tpu.memory_space<vmem>>, %arg5: memref<1x128xf32, #tpu.memory_space<vmem>>, %arg6: memref<1x32xf32, #tpu.memory_space<vmem>>, %arg7: memref<1x32xf32, #tpu.memory_space<vmem>>, %arg8: memref<24x128xbf16, #tpu.memory_space<vmem>>, %arg9: memref<24x32xbf16, #tpu.memory_space<vmem>>) attributes {dimension_semantics = [#tpu.dimension_semantics<parallel>, #tpu.dimension_semantics<arbitrary>, #tpu.dimension_semantics<arbitrary>], iteration_bounds = array<i64: 1, 1, 1>, scalar_prefetch = 0 : i64, scratch_operands = 1 : i64, tpu.core_type = #tpu.core_type<tc>, window_params = [{transform_indices = @transform_0, window_bounds = array<i64: 24, 32>}, {transform_indices = @transform_1, window_bounds = array<i64: 32, 128>}, {transform_indices = @transform_2, window_bounds = array<i64: 1, 128>}, {pipeline_mode = #tpu.pipeline_mode<synchronous>, transform_indices = @transform_3, window_bounds = array<i64: 1, 32>}, {pipeline_mode = #tpu.pipeline_mode<synchronous>, transform_indices = @transform_4, window_bounds = array<i64: 1, 32>}, {transform_indices = @transform_5, window_bounds = array<i64: 24, 128>}]} {
    %c0_i32 = arith.constant 0 : i32
    %0 = arith.cmpi eq, %arg1, %c0_i32 : i32
    %1 = arith.extui %0 : i1 to i32
    %c0_i32_0 = arith.constant 0 : i32
    %2 = arith.cmpi ne, %1, %c0_i32_0 : i32
    scf.if %2 {
      %c0_12 = arith.constant 0 : index
      %c0_13 = arith.constant 0 : index
      %24 = vector.load %arg3[%c0_12, %c0_13] : memref<24x32xbf16, #tpu.memory_space<vmem>>, vector<24x32xbf16>
      %25 = arith.extf %24 : vector<24x32xbf16> to vector<24x32xf32>
      %cst_14 = arith.constant dense<0.000000e+00> : vector<24xf32>
      %26 = vector.multi_reduction <add>, %25, %cst_14 [1] : vector<24x32xf32> to vector<24xf32>
      %27 = vector.shape_cast %26 : vector<24xf32> to vector<24x1xf32>
      %cst_15 = arith.constant 3.200000e+01 : f32
      %28 = vector.broadcast %cst_15 : f32 to vector<24x1xf32>
      %29 = arith.divf %27, %28 : vector<24x1xf32>
      %30 = vector.broadcast %29 : vector<24x1xf32> to vector<24x32xf32>
      %31 = arith.subf %25, %30 : vector<24x32xf32>
      %32 = arith.mulf %31, %31 : vector<24x32xf32>
      %cst_16 = arith.constant dense<0.000000e+00> : vector<24xf32>
      %33 = vector.multi_reduction <add>, %32, %cst_16 [1] : vector<24x32xf32> to vector<24xf32>
      %34 = vector.shape_cast %33 : vector<24xf32> to vector<24x1xf32>
      %cst_17 = arith.constant 3.200000e+01 : f32
      %35 = vector.broadcast %cst_17 : f32 to vector<24x1xf32>
      %36 = arith.divf %34, %35 : vector<24x1xf32>
      %37 = vector.broadcast %29 : vector<24x1xf32> to vector<24x32xf32>
      %38 = arith.subf %25, %37 : vector<24x32xf32>
      %cst_18 = arith.constant 9.99999997E-7 : f32
      %39 = vector.broadcast %cst_18 : f32 to vector<24x1xf32>
      %40 = arith.addf %36, %39 : vector<24x1xf32>
      %41 = math.rsqrt %40 : vector<24x1xf32>
      %42 = vector.broadcast %41 : vector<24x1xf32> to vector<24x32xf32>
      %43 = arith.mulf %38, %42 : vector<24x32xf32>
      %c0_19 = arith.constant 0 : index
      %c0_20 = arith.constant 0 : index
      %44 = vector.load %arg6[%c0_19, %c0_20] : memref<1x32xf32, #tpu.memory_space<vmem>>, vector<1x32xf32>
      %45 = vector.broadcast %44 : vector<1x32xf32> to vector<24x32xf32>
      %46 = arith.mulf %43, %45 : vector<24x32xf32>
      %c0_21 = arith.constant 0 : index
      %c0_22 = arith.constant 0 : index
      %47 = vector.load %arg7[%c0_21, %c0_22] : memref<1x32xf32, #tpu.memory_space<vmem>>, vector<1x32xf32>
      %48 = vector.broadcast %47 : vector<1x32xf32> to vector<24x32xf32>
      %49 = arith.addf %46, %48 : vector<24x32xf32>
      %50 = arith.truncf %49 : vector<24x32xf32> to vector<24x32xbf16>
      %c0_23 = arith.constant 0 : index
      %c0_24 = arith.constant 0 : index
      %51 = vector.load %arg9[%c0_23, %c0_24] : memref<24x32xbf16, #tpu.memory_space<vmem>>, vector<24x32xbf16>
      tpu.vector_store %arg9[%c0_23, %c0_24], %50 {strides = array<i32>} : memref<24x32xbf16, #tpu.memory_space<vmem>>, vector<24x32xbf16>,
    } else {
    }
    %c0 = arith.constant 0 : index
    %c0_1 = arith.constant 0 : index
    %3 = vector.load %arg9[%c0, %c0_1] : memref<24x32xbf16, #tpu.memory_space<vmem>>, vector<24x32xbf16>
    %c0_2 = arith.constant 0 : index
    %c0_3 = arith.constant 0 : index
    %4 = vector.load %arg4[%c0_2, %c0_3] : memref<32x128xbf16, #tpu.memory_space<vmem>>, vector<32x128xbf16>
    %cst = arith.constant dense<0.000000e+00> : vector<24x128xf32>
    %5 = tpu.matmul %3, %4, %cst {dimension_numbers = #tpu.dot_dimension_numbers<[1], [0], [0], [1], [0, 0, 1, 1], [], []>} : vector<24x32xbf16>, vector<32x128xbf16>, vector<24x128xf32> -> vector<24x128xf32>
    %c0_4 = arith.constant 0 : index
    %c0_5 = arith.constant 0 : index
    %6 = vector.load %arg5[%c0_4, %c0_5] : memref<1x128xf32, #tpu.memory_space<vmem>>, vector<1x128xf32>
    %7 = vector.broadcast %6 : vector<1x128xf32> to vector<24x128xf32>
    %8 = arith.addf %5, %7 : vector<24x128xf32>
    %cst_6 = arith.constant 5.000000e-01 : f32
    %9 = vector.broadcast %cst_6 : f32 to vector<24x128xf32>
    %10 = arith.mulf %9, %8 : vector<24x128xf32>
    %cst_7 = arith.constant 4.471500e-02 : f32
    %11 = vector.broadcast %cst_7 : f32 to vector<24x128xf32>
    %12 = arith.mulf %11, %8 : vector<24x128xf32>
    %13 = arith.mulf %12, %8 : vector<24x128xf32>
    %14 = arith.mulf %13, %8 : vector<24x128xf32>
    %15 = arith.addf %8, %14 : vector<24x128xf32>
    %cst_8 = arith.constant 0.797884583 : f32
    %16 = vector.broadcast %cst_8 : f32 to vector<24x128xf32>
    %17 = arith.mulf %16, %15 : vector<24x128xf32>
    %18 = math.tanh %17 : vector<24x128xf32>
    %cst_9 = arith.constant 1.000000e+00 : f32
    %19 = vector.broadcast %cst_9 : f32 to vector<24x128xf32>
    %20 = arith.addf %19, %18 : vector<24x128xf32>
    %21 = arith.mulf %10, %20 : vector<24x128xf32>
    %22 = arith.truncf %21 : vector<24x128xf32> to vector<24x128xbf16>
    %c0_10 = arith.constant 0 : index
    %c0_11 = arith.constant 0 : index
    %23 = vector.load %arg8[%c0_10, %c0_11] : memref<24x128xbf16, #tpu.memory_space<vmem>>, vector<24x128xbf16>
    tpu.vector_store %arg8[%c0_10, %c0_11], %22 {strides = array<i32>} : memref<24x128xbf16, #tpu.memory_space<vmem>>, vector<24x128xbf16>,
    return
  }
  func.func @transform_0(%arg0: i32, %arg1: i32, %arg2: i32) -> (i32, i32) {
    %c0_i32 = arith.constant 0 : i32
    return %arg0, %arg2 : i32, i32
  }
  func.func @transform_1(%arg0: i32, %arg1: i32, %arg2: i32) -> (i32, i32) {
    %c0_i32 = arith.constant 0 : i32
    return %arg2, %arg1 : i32, i32
  }
  func.func @transform_2(%arg0: i32, %arg1: i32, %arg2: i32) -> (i32, i32) {
    %c0_i32 = arith.constant 0 : i32
    %c0_i32_0 = arith.constant 0 : i32
    return %c0_i32, %arg1 : i32, i32
  }
  func.func @transform_3(%arg0: i32, %arg1: i32, %arg2: i32) -> (i32, i32) {
    %c0_i32 = arith.constant 0 : i32
    %c0_i32_0 = arith.constant 0 : i32
    %c0_i32_1 = arith.constant 0 : i32
    return %c0_i32, %c0_i32_0 : i32, i32
  }
  func.func @transform_4(%arg0: i32, %arg1: i32, %arg2: i32) -> (i32, i32) {
    %c0_i32 = arith.constant 0 : i32
    %c0_i32_0 = arith.constant 0 : i32
    %c0_i32_1 = arith.constant 0 : i32
    return %c0_i32, %c0_i32_0 : i32, i32
  }
  func.func @transform_5(%arg0: i32, %arg1: i32, %arg2: i32) -> (i32, i32) {
    %c0_i32 = arith.constant 0 : i32
    return %arg0, %arg1 : i32, i32
  }
}

module attributes {stable_mosaic.version = 11 : i64} {
  func.func @_fused_linear_kernel(%arg0: i32, %arg1: i32, %arg2: i32, %arg3: memref<8x32xf32, #tpu.memory_space<vmem>>, %arg4: memref<32x128xbf16, #tpu.memory_space<vmem>>, %arg5: memref<1x128xf32, #tpu.memory_space<vmem>>, %arg6: memref<1x32xf32, #tpu.memory_space<vmem>>, %arg7: memref<1x32xf32, #tpu.memory_space<vmem>>, %arg8: memref<8x128xf32, #tpu.memory_space<vmem>>, %arg9: memref<8x32xbf16, #tpu.memory_space<vmem>>) attributes {dimension_semantics = [#tpu.dimension_semantics<parallel>, #tpu.dimension_semantics<arbitrary>, #tpu.dimension_semantics<arbitrary>], iteration_bounds = array<i64: 1, 1, 1>, scalar_prefetch = 0 : i64, scratch_operands = 1 : i64, tpu.core_type = #tpu.core_type<tc>, window_params = [{transform_indices = @transform_0, window_bounds = array<i64: 8, 32>}, {transform_indices = @transform_1, window_bounds = array<i64: 32, 128>}, {transform_indices = @transform_2, window_bounds = array<i64: 1, 128>}, {pipeline_mode = #tpu.pipeline_mode<synchronous>, transform_indices = @transform_3, window_bounds = array<i64: 1, 32>}, {pipeline_mode = #tpu.pipeline_mode<synchronous>, transform_indices = @transform_4, window_bounds = array<i64: 1, 32>}, {transform_indices = @transform_5, window_bounds = array<i64: 8, 128>}]} {
    %c0_i32 = arith.constant 0 : i32
    %0 = arith.cmpi eq, %arg1, %c0_i32 : i32
    %1 = arith.extui %0 : i1 to i32
    %c0_i32_0 = arith.constant 0 : i32
    %2 = arith.cmpi ne, %1, %c0_i32_0 : i32
    scf.if %2 {
      %c0_8 = arith.constant 0 : index
      %c0_9 = arith.constant 0 : index
      %10 = vector.load %arg3[%c0_8, %c0_9] : memref<8x32xf32, #tpu.memory_space<vmem>>, vector<8x32xf32>
      %cst_10 = arith.constant dense<0.000000e+00> : vector<8xf32>
      %11 = vector.multi_reduction <add>, %10, %cst_10 [1] : vector<8x32xf32> to vector<8xf32>
      %12 = vector.shape_cast %11 : vector<8xf32> to vector<8x1xf32>
      %cst_11 = arith.constant 3.200000e+01 : f32
      %13 = vector.broadcast %cst_11 : f32 to vector<8x1xf32>
      %14 = arith.divf %12, %13 : vector<8x1xf32>
      %15 = vector.broadcast %14 : vector<8x1xf32> to vector<8x32xf32>
      %16 = arith.subf %10, %15 : vector<8x32xf32>
      %17 = arith.mulf %16, %16 : vector<8x32xf32>
      %cst_12 = arith.constant dense<0.000000e+00> : vector<8xf32>
      %18 = vector.multi_reduction <add>, %17, %cst_12 [1] : vector<8x32xf32> to vector<8xf32>
      %19 = vector.shape_cast %18 : vector<8xf32> to vector<8x1xf32>
      %cst_13 = arith.constant 3.200000e+01 : f32
      %20 = vector.broadcast %cst_13 : f32 to vector<8x1xf32>
      %21 = arith.divf %19, %20 : vector<8x1xf32>
      %22 = vector.broadcast %14 : vector<8x1xf32> to vector<8x32xf32>
      %23 = arith.subf %10, %22 : vector<8x32xf32>
      %cst_14 = arith.constant 9.99999974E-6 : f32
      %24 = vector.broadcast %cst_14 : f32 to vector<8x1xf32>
      %25 = arith.addf %21, %24 : vector<8x1xf32>
      %26 = math.rsqrt %25 : vector<8x1xf32>
      %27 = vector.broadcast %26 : vector<8x1xf32> to vector<8x32xf32>
      %28 = arith.mulf %23, %27 : vector<8x32xf32>
      %c0_15 = arith.constant 0 : index
      %c0_16 = arith.constant 0 : index
      %29 = vector.load %arg6[%c0_15, %c0_16] : memref<1x32xf32, #tpu.memory_space<vmem>>, vector<1x32xf32>
      %30 = vector.broadcast %29 : vector<1x32xf32> to vector<8x32xf32>
      %31 = arith.mulf %28, %30 : vector<8x32xf32>
      %c0_17 = arith.constant 0 : index
      %c0_18 = arith.constant 0 : index
      %32 = vector.load %arg7[%c0_17, %c0_18] : memref<1x32xf32, #tpu.memory_space<vmem>>, vector<1x32xf32>
      %33 = vector.broadcast %32 : vector<1x32xf32> to vector<8x32xf32>
      %34 = arith.addf %31, %33 : vector<8x32xf32>
      %35 = arith.truncf %34 : vector<8x32xf32> to vector<8x32xbf16>
      %c0_19 = arith.constant 0 : index
      %c0_20 = arith.constant 0 : index
      %36 = vector.load %arg9[%c0_19, %c0_20] : memref<8x32xbf16, #tpu.memory_space<vmem>>, vector<8x32xbf16>
      tpu.vector_store %arg9[%c0_19, %c0_20], %35 {strides = array<i32>} : memref<8x32xbf16, #tpu.memory_space<vmem>>, vector<8x32xbf16>,
    } else {
    }
    %c0 = arith.constant 0 : index
    %c0_1 = arith.constant 0 : index
    %3 = vector.load %arg9[%c0, %c0_1] : memref<8x32xbf16, #tpu.memory_space<vmem>>, vector<8x32xbf16>
    %c0_2 = arith.constant 0 : index
    %c0_3 = arith.constant 0 : index
    %4 = vector.load %arg4[%c0_2, %c0_3] : memref<32x128xbf16, #tpu.memory_space<vmem>>, vector<32x128xbf16>
    %cst = arith.constant dense<0.000000e+00> : vector<8x128xf32>
    %5 = tpu.matmul %3, %4, %cst {dimension_numbers = #tpu.dot_dimension_numbers<[1], [0], [0], [1], [0, 0, 1, 1], [], []>} : vector<8x32xbf16>, vector<32x128xbf16>, vector<8x128xf32> -> vector<8x128xf32>
    %c0_4 = arith.constant 0 : index
    %c0_5 = arith.constant 0 : index
    %6 = vector.load %arg5[%c0_4, %c0_5] : memref<1x128xf32, #tpu.memory_space<vmem>>, vector<1x128xf32>
    %7 = vector.broadcast %6 : vector<1x128xf32> to vector<8x128xf32>
    %8 = arith.addf %5, %7 : vector<8x128xf32>
    %c0_6 = arith.constant 0 : index
    %c0_7 = arith.constant 0 : index
    %9 = vector.load %arg8[%c0_6, %c0_7] : memref<8x128xf32, #tpu.memory_space<vmem>>, vector<8x128xf32>
    tpu.vector_store %arg8[%c0_6, %c0_7], %8 {strides = array<i32>} : memref<8x128xf32, #tpu.memory_space<vmem>>, vector<8x128xf32>,
    return
  }
  func.func @transform_0(%arg0: i32, %arg1: i32, %arg2: i32) -> (i32, i32) {
    %c0_i32 = arith.constant 0 : i32
    return %arg0, %arg2 : i32, i32
  }
  func.func @transform_1(%arg0: i32, %arg1: i32, %arg2: i32) -> (i32, i32) {
    %c0_i32 = arith.constant 0 : i32
    return %arg2, %arg1 : i32, i32
  }
  func.func @transform_2(%arg0: i32, %arg1: i32, %arg2: i32) -> (i32, i32) {
    %c0_i32 = arith.constant 0 : i32
    %c0_i32_0 = arith.constant 0 : i32
    return %c0_i32, %arg1 : i32, i32
  }
  func.func @transform_3(%arg0: i32, %arg1: i32, %arg2: i32) -> (i32, i32) {
    %c0_i32 = arith.constant 0 : i32
    %c0_i32_0 = arith.constant 0 : i32
    %c0_i32_1 = arith.constant 0 : i32
    return %c0_i32, %c0_i32_0 : i32, i32
  }
  func.func @transform_4(%arg0: i32, %arg1: i32, %arg2: i32) -> (i32, i32) {
    %c0_i32 = arith.constant 0 : i32
    %c0_i32_0 = arith.constant 0 : i32
    %c0_i32_1 = arith.constant 0 : i32
    return %c0_i32, %c0_i32_0 : i32, i32
  }
  func.func @transform_5(%arg0: i32, %arg1: i32, %arg2: i32) -> (i32, i32) {
    %c0_i32 = arith.constant 0 : i32
    return %arg0, %arg1 : i32, i32
  }
}

</mosaic_0001>

<llo_original>
// kernel: _lambda_.13
$region0: #{_lambda_.13}
  #allocation0 [shape = 'u32[]', space=smem, size = 0x4, offset = 0x4, fixed_abs, tag = 'smem constant byte address 0x4 - core index']
  #allocation1 [shape = 'u32[144,128]{1,0:T(1,128)}', space=vmem, size = 0x12000, scoped, tag = 'internal scratch']
  #allocation2 [shape = 'bf16[24,32]{1,0:T(8,128)(2,1)}', space=vmem, size = 0x1800, scoped, tag = 'scratch operand']
  %s0 = inlined_call_operand.vmem [shape: bf16[24,32], index: 0, kind: input, shape index: {}]
  %s1 = inlined_call_operand.vmem [shape: bf16[32,128], index: 1, kind: input, shape index: {}]
  %s2 = inlined_call_operand.vmem [shape: f32[1,128], index: 2, kind: input, shape index: {}]
  %s3 = inlined_call_operand.vmem [shape: f32[1,32], index: 3, kind: input, shape index: {}]
  %s4 = inlined_call_operand.vmem [shape: f32[1,32], index: 4, kind: input, shape index: {}]
  %s5 = inlined_call_operand.vmem [shape: bf16[24,128], index: 5, kind: output, shape index: {}]
  %s6 = sld [smem:[#allocation0]]
  $region34: #{_lambda_.13} parent=0
    _
  %s8 = ssub.s32 1, %s6
  %s9 = scalar_select 0, %s8, %s6
  // Predicated region
  $region2: #{_lambda_.13} parent=0 // pred_check
    _
  $region3: #{_lambda_.13} parent=0 // pred_check_branch
    %11 = sbr.rel (0) target = $region5
  $region4: #{_lambda_.13} parent=0 // pred_region
    _
  $region5: #{_lambda_.13} parent=0 // pred_fallthru
    _
  // Predicated region
  $region6: #{_lambda_.13} parent=0 // pred_check
    _
  $region7: #{_lambda_.13} parent=0 // pred_check_branch
    %13 = sbr.rel (0) target = $region9
  $region8: #{_lambda_.13} parent=0 // pred_region
    _
  $region9: #{_lambda_.13} parent=0 // pred_fallthru
    _
  // Predicated region
  $region10: #{_lambda_.13} parent=0 // pred_check
    _
  $region11: #{_lambda_.13} parent=0 // pred_check_branch
    %15 = sbr.rel (0) target = $region13
  $region12: #{_lambda_.13} parent=0 // pred_region
    _
  $region13: #{_lambda_.13} parent=0 // pred_fallthru
    _
  // Predicated region
  $region14: #{_lambda_.13} parent=0 // pred_check
    _
  $region15: #{_lambda_.13} parent=0 // pred_check_branch
    %17 = sbr.rel (0) target = $region17
  $region16: #{_lambda_.13} parent=0 // pred_region
    _
  $region17: #{_lambda_.13} parent=0 // pred_fallthru
    _
  // Predicated region
  $region18: #{_lambda_.13} parent=0 // pred_check
    _
  $region19: #{_lambda_.13} parent=0 // pred_check_branch
    %19 = sbr.rel (0) target = $region21
  $region20: #{_lambda_.13} parent=0 // pred_region
    _
  $region21: #{_lambda_.13} parent=0 // pred_fallthru
    _
  %p21 = scmp.eq.s32.totalorder 0, 0
  // Predicated region
  $region22: #{_lambda_.13} parent=0 // pred_check
    %p22 = pneg %p21
  $region23: #{_lambda_.13} parent=0 // pred_check_branch
    %24 = sbr.rel (%p22) target = $region25
  $region24: #{_lambda_.13} parent=0 // pred_region
    %v25 = vld [vmem:[%s0] sm:$0xf]
    %v26 = vld [vmem:[%s0 + $0x4] sm:$0xf]
    %v27 = vld [vmem:[%s0 + $0x8] sm:$0xf]
    %v28 = vunpack.c.l.bf16 %v25
    %v29 = vunpack.c.l.bf16 %v26
    %v30 = vunpack.c.l.bf16 %v27
    %vm31 = vcmask 261120
    %v32 = vsel %vm31, %v28, 0.0
    %33 = vadd.xlane.f32.xlu0 %v32
    %v34 = vpop.xlane.xlu0 %33
    %v35 = vsel %vm31, %v29, 0.0
    %36 = vadd.xlane.f32.xlu0 %v35
    %v37 = vpop.xlane.xlu0 %36
    %v38 = vsel %vm31, %v30, 0.0
    %39 = vadd.xlane.f32.xlu0 %v38
    %v40 = vpop.xlane.xlu0 %39
    %v41 = vrcp.pop 32.0
    %v42 = vmul.f32 %v34, %v41
    %v43 = vmul.f32 %v37, %v41
    %v44 = vmul.f32 %v40, %v41
    %v45 = vsub.f32 %v28, %v42
    %v46 = vsub.f32 %v29, %v43
    %v47 = vsub.f32 %v30, %v44
    %v48 = vmul.f32 %v45, %v45
    %v49 = vmul.f32 %v46, %v46
    %v50 = vmul.f32 %v47, %v47
    %v51 = vsel %vm31, %v48, 0.0
    %52 = vadd.xlane.f32.xlu0 %v51
    %v53 = vpop.xlane.xlu0 %52
    %v54 = vsel %vm31, %v49, 0.0
    %55 = vadd.xlane.f32.xlu0 %v54
    %v56 = vpop.xlane.xlu0 %55
    %v57 = vsel %vm31, %v50, 0.0
    %58 = vadd.xlane.f32.xlu0 %v57
    %v59 = vpop.xlane.xlu0 %58
    %v60 = vmul.f32 %v53, %v41
    %v61 = vmul.f32 %v56, %v41
    %v62 = vmul.f32 %v59, %v41
    %v63 = vadd.f32 %v60, 1e-06
    %v64 = vadd.f32 %v61, 1e-06
    %v65 = vadd.f32 %v62, 1e-06
    %v66 = vrsqrt.pop %v63
    %v67 = vrsqrt.pop %v64
    %v68 = vrsqrt.pop %v65
    %v69 = vmul.f32 %v45, %v66
    %v70 = vmul.f32 %v46, %v67
    %v71 = vmul.f32 %v47, %v68
    %v72 = vld [vmem:[%s3] sm:$0x1]
    %v74 = vlaneseq
    %v75 = vshrl.u32 %v74, 7
    %v76 = vsub.s32 0, %v75
    %v77 = vrot.slane %v72, %v76
    %v79 = vmul.f32 %v69, %v77
    %v80 = vmul.f32 %v70, %v77
    %v81 = vmul.f32 %v71, %v77
    %v82 = vld [vmem:[%s4] sm:$0x1]
    %v84 = vlaneseq
    %v85 = vshrl.u32 %v84, 7
    %v86 = vsub.s32 0, %v85
    %v87 = vrot.slane %v82, %v86
    %v89 = vadd.f32 %v79, %v87
    %v90 = vadd.f32 %v80, %v87
    %v91 = vadd.f32 %v81, %v87
    %v92 = vpack.c.bf16 %v90, %v89
    %v93 = vpack.c.bf16 %v91, %v91
    %v96 = vunpack.c.l.b16 %v92
    %v97 = vunpack.c.h.b16 %v92
    %v98 = vunpack.c.l.b16 %v93
    %v99 = vpack.c.b16 %v96, %v96
    %v100 = vpack.c.b16 %v97, %v97
    %v101 = vpack.c.b16 %v98, %v98
    %vm105 = vcmask 257024
    %106 = vst.msk [vmem:[#allocation2] sm:$0xf] %vm105, %v99
    %107 = vst.msk [vmem:[#allocation2 + $0x4] sm:$0xf] %vm105, %v100
    %108 = vst.msk [vmem:[#allocation2 + $0x8] sm:$0xf] %vm105, %v101
  $region25: #{_lambda_.13} parent=0 // pred_fallthru
    _
  %v109 = vld [vmem:[#allocation2] sm:$0xf]
  %v110 = vld [vmem:[#allocation2 + $0x4] sm:$0xf]
  %v111 = vld [vmem:[#allocation2 + $0x8] sm:$0xf]
  %v112 = vld [vmem:[%s1] sm:$0xf]
  %v113 = vld [vmem:[%s1 + $0x4] sm:$0xf]
  %v114 = vld [vmem:[%s1 + $0x8] sm:$0xf]
  %v115 = vld [vmem:[%s1 + $0xc] sm:$0xf]
  %v116 = vld [vmem:[%s2] sm:$0x1]
  %v118 = vlaneseq
  %v119 = vshrl.u32 %v118, 7
  %v120 = vsub.s32 0, %v119
  %v121 = vrot.slane %v116, %v120
  %v126 = vunpack.c.l.b16 %v109
  %v127 = vunpack.c.l.b16 %v110
  %v128 = vunpack.c.l.b16 %v111
  %v129 = vpack.c.b16 %v127, %v126
  %v130 = vpack.c.b16 %v128, %v128
  %v135 = vunpack.c.l.b16 %v112
  %v136 = vunpack.c.l.b16 %v113
  %v137 = vunpack.c.l.b16 %v114
  %v138 = vunpack.c.l.b16 %v115
  %v139 = vpack.c.b16 %v136, %v135
  %v140 = vpack.c.b16 %v138, %v137
  %vm143 = vcmask 261120
  %v145 = vsel %vm143, %v129, 0
  %v148 = vsel %vm143, %v130, 0
  %150 = vmatprep.subr.bf16.mxu0 0
  %151 = vmatpush1.bf16.msra.mxu0 0
  %152 = vmatprep.subr.bf16.mxu0 0
  %153 = vmatpush1.bf16.msra.mxu0 0
  %154 = vmatprep.subr.bf16.mxu0 0
  %155 = vmatpush1.bf16.msra.mxu0 0
  %156 = vmatprep.subr.bf16.mxu0 0
  %157 = vmatpush1.bf16.msra.mxu0 0
  %158 = vmatprep.subr.bf16.mxu0 0
  %159 = vmatpush1.bf16.msra.mxu0 0
  %160 = vmatprep.subr.bf16.mxu0 0
  %161 = vmatpush1.bf16.msra.mxu0 0
  %162 = vmatprep.subr.bf16.mxu0 0
  %163 = vmatpush1.bf16.msra.mxu0 %v140
  %164 = vmatprep.subr.bf16.mxu0 0
  %165 = vmatpush1.bf16.msra.mxu0 %v139
  %166 = vmatprep.subr.bf16.mxu0 0
  %167 = vmatpush2.bf16.msra.mxu0 0
  %168 = vmatprep.subr.bf16.mxu0 0
  %169 = vmatpush2.bf16.msra.mxu0 0
  %170 = vmatprep.subr.bf16.mxu0 0
  %171 = vmatpush2.bf16.msra.mxu0 0
  %172 = vmatprep.subr.bf16.mxu0 0
  %173 = vmatpush2.bf16.msra.mxu0 0
  %174 = vmatprep.subr.bf16.mxu0 0
  %175 = vmatpush2.bf16.msra.mxu0 0
  %176 = vmatprep.subr.bf16.mxu0 0
  %177 = vmatpush2.bf16.msra.mxu0 0
  %178 = vmatprep.subr.bf16.mxu0 0
  %179 = vmatpush2.bf16.msra.mxu0 0
  %180 = vmatprep.subr.bf16.mxu0 0
  %181 = vmatpush2.bf16.msra.mxu0 0
  %182 = vmatprep.mubr.bf16.mxu0 0
  %183 = vmatmul.mubr.bf16.gmra.mxu0 %v145
  %v184 = vpop.f32.mrf.mxu0
  %v185 = vadd.f32 %v121, %v184
  %v186 = vpop.f32.mrf.mxu0
  %v187 = vpop.f32.mrf.mxu0
  %v188 = vadd.f32 %v121, %v187
  %v189 = vpop.f32.mrf.mxu0
  %190 = vmatprep.mubr.bf16.mxu0 0
  %191 = vmatmul.mubr.bf16.gmra.mxu0 %v148
  %v192 = vpop.f32.mrf.mxu0
  %v193 = vadd.f32 %v121, %v192
  %v194 = vpop.f32.mrf.mxu0
  %v195 = vpop.f32.mrf.mxu0
  %v196 = vpop.f32.mrf.mxu0
  %197 = vdwg.mxu0
  %v198 = vpack.c.bf16 %v188, %v185
  %v199 = vpack.c.bf16 %v193, %v193
  %v202 = vunpack.c.l.b16 %v198
  %v203 = vunpack.c.h.b16 %v198
  %v204 = vunpack.c.l.b16 %v199
  %v205 = vpack.c.b16 %v202, %v202
  %v206 = vpack.c.b16 %v203, %v203
  %v207 = vpack.c.b16 %v204, %v204
  %211 = vst [vmem:[%s5] sm:$0xf] %v205
  %212 = vst [vmem:[%s5 + $0x4] sm:$0xf] %v206
  %213 = vst [vmem:[%s5 + $0x8] sm:$0xf] %v207
  // Predicated region
  $region26: #{_lambda_.13} parent=0 // pred_check
    _
  $region27: #{_lambda_.13} parent=0 // pred_check_branch
    %215 = sbr.rel (0) target = $region29
  $region28: #{_lambda_.13} parent=0 // pred_region
    _
  $region29: #{_lambda_.13} parent=0 // pred_fallthru
    _
  // Predicated region
  $region30: #{_lambda_.13} parent=0 // pred_check
    _
  $region31: #{_lambda_.13} parent=0 // pred_check_branch
    %217 = sbr.rel (0) target = $region33
  $region32: #{_lambda_.13} parent=0 // pred_region
    _
  $region33: #{_lambda_.13} parent=0 // pred_fallthru
    _

// kernel: _lambda_.12
$region0: #{_lambda_.12}
  #allocation0 [shape = 'u32[]', space=smem, size = 0x4, offset = 0x4, fixed_abs, tag = 'smem constant byte address 0x4 - core index']
  #allocation1 [shape = 'u32[144,128]{1,0:T(1,128)}', space=vmem, size = 0x12000, scoped, tag = 'internal scratch']
  %s0 = inlined_call_operand.vmem [shape: f32[24,128], index: 0, kind: input, shape index: {}]
  %s1 = inlined_call_operand.vmem [shape: bf16[128,128], index: 1, kind: input, shape index: {}]
  %s2 = inlined_call_operand.vmem [shape: f32[1,128], index: 2, kind: input, shape index: {}]
  %s3 = inlined_call_operand.vmem [shape: bf16[24,128], index: 3, kind: output, shape index: {}]
  %s4 = sld [smem:[#allocation0]]
  $region22: #{_lambda_.12} parent=0
    _
  %s6 = ssub.s32 1, %s4
  %s7 = scalar_select 0, %s6, %s4
  // Predicated region
  $region2: #{_lambda_.12} parent=0 // pred_check
    _
  $region3: #{_lambda_.12} parent=0 // pred_check_branch
    %9 = sbr.rel (0) target = $region5
  $region4: #{_lambda_.12} parent=0 // pred_region
    _
  $region5: #{_lambda_.12} parent=0 // pred_fallthru
    _
  // Predicated region
  $region6: #{_lambda_.12} parent=0 // pred_check
    _
  $region7: #{_lambda_.12} parent=0 // pred_check_branch
    %11 = sbr.rel (0) target = $region9
  $region8: #{_lambda_.12} parent=0 // pred_region
    _
  $region9: #{_lambda_.12} parent=0 // pred_fallthru
    _
  // Predicated region
  $region10: #{_lambda_.12} parent=0 // pred_check
    _
  $region11: #{_lambda_.12} parent=0 // pred_check_branch
    %13 = sbr.rel (0) target = $region13
  $region12: #{_lambda_.12} parent=0 // pred_region
    _
  $region13: #{_lambda_.12} parent=0 // pred_fallthru
    _
  %v15 = vld [vmem:[%s0] sm:$0xff]
  %v16 = vld [vmem:[%s0 + $0x8] sm:$0xff]
  %v17 = vld [vmem:[%s0 + $0x10] sm:$0xff]
  %v18 = vpack.c.bf16 %v16, %v15
  %v19 = vpack.c.bf16 %v17, %v17
  %v20 = vld [vmem:[%s1] sm:$0xf]
  %v21 = vld [vmem:[%s1 + $0x4] sm:$0xf]
  %v22 = vld [vmem:[%s1 + $0x8] sm:$0xf]
  %v23 = vld [vmem:[%s1 + $0xc] sm:$0xf]
  %v24 = vld [vmem:[%s1 + $0x10] sm:$0xf]
  %v25 = vld [vmem:[%s1 + $0x14] sm:$0xf]
  %v26 = vld [vmem:[%s1 + $0x18] sm:$0xf]
  %v27 = vld [vmem:[%s1 + $0x1c] sm:$0xf]
  %v28 = vld [vmem:[%s1 + $0x20] sm:$0xf]
  %v29 = vld [vmem:[%s1 + $0x24] sm:$0xf]
  %v30 = vld [vmem:[%s1 + $0x28] sm:$0xf]
  %v31 = vld [vmem:[%s1 + $0x2c] sm:$0xf]
  %v32 = vld [vmem:[%s1 + $0x30] sm:$0xf]
  %v33 = vld [vmem:[%s1 + $0x34] sm:$0xf]
  %v34 = vld [vmem:[%s1 + $0x38] sm:$0xf]
  %v35 = vld [vmem:[%s1 + $0x3c] sm:$0xf]
  %v36 = vld [vmem:[%s2] sm:$0x1]
  %v38 = vlaneseq
  %v39 = vshrl.u32 %v38, 7
  %v40 = vsub.s32 0, %v39
  %v41 = vrot.slane %v36, %v40
  %v59 = vunpack.c.l.b16 %v20
  %v60 = vunpack.c.l.b16 %v21
  %v61 = vunpack.c.l.b16 %v22
  %v62 = vunpack.c.l.b16 %v23
  %v63 = vunpack.c.l.b16 %v24
  %v64 = vunpack.c.l.b16 %v25
  %v65 = vunpack.c.l.b16 %v26
  %v66 = vunpack.c.l.b16 %v27
  %v67 = vunpack.c.l.b16 %v28
  %v68 = vunpack.c.l.b16 %v29
  %v69 = vunpack.c.l.b16 %v30
  %v70 = vunpack.c.l.b16 %v31
  %v71 = vunpack.c.l.b16 %v32
  %v72 = vunpack.c.l.b16 %v33
  %v73 = vunpack.c.l.b16 %v34
  %v74 = vunpack.c.l.b16 %v35
  %v75 = vpack.c.b16 %v60, %v59
  %v76 = vpack.c.b16 %v62, %v61
  %v77 = vpack.c.b16 %v64, %v63
  %v78 = vpack.c.b16 %v66, %v65
  %v79 = vpack.c.b16 %v68, %v67
  %v80 = vpack.c.b16 %v70, %v69
  %v81 = vpack.c.b16 %v72, %v71
  %v82 = vpack.c.b16 %v74, %v73
  %91 = vmatprep.subr.bf16.mxu0 0
  %92 = vmatpush1.bf16.msra.mxu0 %v82
  %93 = vmatprep.subr.bf16.mxu0 0
  %94 = vmatpush1.bf16.msra.mxu0 %v81
  %95 = vmatprep.subr.bf16.mxu0 0
  %96 = vmatpush1.bf16.msra.mxu0 %v80
  %97 = vmatprep.subr.bf16.mxu0 0
  %98 = vmatpush1.bf16.msra.mxu0 %v79
  %99 = vmatprep.subr.bf16.mxu0 0
  %100 = vmatpush1.bf16.msra.mxu0 %v78
  %101 = vmatprep.subr.bf16.mxu0 0
  %102 = vmatpush1.bf16.msra.mxu0 %v77
  %103 = vmatprep.subr.bf16.mxu0 0
  %104 = vmatpush1.bf16.msra.mxu0 %v76
  %105 = vmatprep.subr.bf16.mxu0 0
  %106 = vmatpush1.bf16.msra.mxu0 %v75
  %107 = vmatprep.subr.bf16.mxu0 0
  %108 = vmatpush2.bf16.msra.mxu0 0
  %109 = vmatprep.subr.bf16.mxu0 0
  %110 = vmatpush2.bf16.msra.mxu0 0
  %111 = vmatprep.subr.bf16.mxu0 0
  %112 = vmatpush2.bf16.msra.mxu0 0
  %113 = vmatprep.subr.bf16.mxu0 0
  %114 = vmatpush2.bf16.msra.mxu0 0
  %115 = vmatprep.subr.bf16.mxu0 0
  %116 = vmatpush2.bf16.msra.mxu0 0
  %117 = vmatprep.subr.bf16.mxu0 0
  %118 = vmatpush2.bf16.msra.mxu0 0
  %119 = vmatprep.subr.bf16.mxu0 0
  %120 = vmatpush2.bf16.msra.mxu0 0
  %121 = vmatprep.subr.bf16.mxu0 0
  %122 = vmatpush2.bf16.msra.mxu0 0
  %123 = vmatprep.mubr.bf16.mxu0 0
  %124 = vmatmul.mubr.bf16.gmra.mxu0 %v18
  %v125 = vpop.f32.mrf.mxu0
  %v126 = vadd.f32 %v41, %v125
  %v127 = vpop.f32.mrf.mxu0
  %v128 = vpop.f32.mrf.mxu0
  %v129 = vadd.f32 %v41, %v128
  %v130 = vpop.f32.mrf.mxu0
  %131 = vmatprep.mubr.bf16.mxu0 0
  %132 = vmatmul.mubr.bf16.gmra.mxu0 %v19
  %v133 = vpop.f32.mrf.mxu0
  %v134 = vadd.f32 %v41, %v133
  %v135 = vpop.f32.mrf.mxu0
  %v136 = vpop.f32.mrf.mxu0
  %v137 = vpop.f32.mrf.mxu0
  %138 = vdwg.mxu0
  %v139 = vpack.c.bf16 %v129, %v126
  %v140 = vpack.c.bf16 %v134, %v134
  %v143 = vunpack.c.l.b16 %v139
  %v144 = vunpack.c.h.b16 %v139
  %v145 = vunpack.c.l.b16 %v140
  %v146 = vpack.c.b16 %v143, %v143
  %v147 = vpack.c.b16 %v144, %v144
  %v148 = vpack.c.b16 %v145, %v145
  %152 = vst [vmem:[%s3] sm:$0xf] %v146
  %153 = vst [vmem:[%s3 + $0x4] sm:$0xf] %v147
  %154 = vst [vmem:[%s3 + $0x8] sm:$0xf] %v148
  // Predicated region
  $region14: #{_lambda_.12} parent=0 // pred_check
    _
  $region15: #{_lambda_.12} parent=0 // pred_check_branch
    %156 = sbr.rel (0) target = $region17
  $region16: #{_lambda_.12} parent=0 // pred_region
    _
  $region17: #{_lambda_.12} parent=0 // pred_fallthru
    _
  // Predicated region
  $region18: #{_lambda_.12} parent=0 // pred_check
    _
  $region19: #{_lambda_.12} parent=0 // pred_check_branch
    %158 = sbr.rel (0) target = $region21
  $region20: #{_lambda_.12} parent=0 // pred_region
    _
  $region21: #{_lambda_.12} parent=0 // pred_fallthru
    _

// kernel: _lambda_.15
$region0: #{_lambda_.15}
  #allocation0 [shape = 'u32[]', space=smem, size = 0x4, offset = 0x4, fixed_abs, tag = 'smem constant byte address 0x4 - core index']
  #allocation1 [shape = 'u32[144,128]{1,0:T(1,128)}', space=vmem, size = 0x12000, scoped, tag = 'internal scratch']
  %s0 = inlined_call_operand.vmem [shape: bf16[24,128], index: 0, kind: input, shape index: {}]
  %s1 = inlined_call_operand.vmem [shape: bf16[128,128], index: 1, kind: input, shape index: {}]
  %s2 = inlined_call_operand.vmem [shape: f32[1,128], index: 2, kind: input, shape index: {}]
  %s3 = inlined_call_operand.vmem [shape: bf16[24,128], index: 3, kind: input, shape index: {}]
  %s4 = inlined_call_operand.vmem [shape: bf16[24,128], index: 4, kind: output, shape index: {}]
  %s5 = sld [smem:[#allocation0]]
  $region26: #{_lambda_.15} parent=0
    _
  %s7 = ssub.s32 1, %s5
  %s8 = scalar_select 0, %s7, %s5
  // Predicated region
  $region2: #{_lambda_.15} parent=0 // pred_check
    _
  $region3: #{_lambda_.15} parent=0 // pred_check_branch
    %10 = sbr.rel (0) target = $region5
  $region4: #{_lambda_.15} parent=0 // pred_region
    _
  $region5: #{_lambda_.15} parent=0 // pred_fallthru
    _
  // Predicated region
  $region6: #{_lambda_.15} parent=0 // pred_check
    _
  $region7: #{_lambda_.15} parent=0 // pred_check_branch
    %12 = sbr.rel (0) target = $region9
  $region8: #{_lambda_.15} parent=0 // pred_region
    _
  $region9: #{_lambda_.15} parent=0 // pred_fallthru
    _
  // Predicated region
  $region10: #{_lambda_.15} parent=0 // pred_check
    _
  $region11: #{_lambda_.15} parent=0 // pred_check_branch
    %14 = sbr.rel (0) target = $region13
  $region12: #{_lambda_.15} parent=0 // pred_region
    _
  $region13: #{_lambda_.15} parent=0 // pred_fallthru
    _
  // Predicated region
  $region14: #{_lambda_.15} parent=0 // pred_check
    _
  $region15: #{_lambda_.15} parent=0 // pred_check_branch
    %16 = sbr.rel (0) target = $region17
  $region16: #{_lambda_.15} parent=0 // pred_region
    _
  $region17: #{_lambda_.15} parent=0 // pred_fallthru
    _
  %v18 = vld [vmem:[%s0] sm:$0xf]
  %v19 = vld [vmem:[%s0 + $0x4] sm:$0xf]
  %v20 = vld [vmem:[%s0 + $0x8] sm:$0xf]
  %v21 = vld [vmem:[%s1] sm:$0xf]
  %v22 = vld [vmem:[%s1 + $0x4] sm:$0xf]
  %v23 = vld [vmem:[%s1 + $0x8] sm:$0xf]
  %v24 = vld [vmem:[%s1 + $0xc] sm:$0xf]
  %v25 = vld [vmem:[%s1 + $0x10] sm:$0xf]
  %v26 = vld [vmem:[%s1 + $0x14] sm:$0xf]
  %v27 = vld [vmem:[%s1 + $0x18] sm:$0xf]
  %v28 = vld [vmem:[%s1 + $0x1c] sm:$0xf]
  %v29 = vld [vmem:[%s1 + $0x20] sm:$0xf]
  %v30 = vld [vmem:[%s1 + $0x24] sm:$0xf]
  %v31 = vld [vmem:[%s1 + $0x28] sm:$0xf]
  %v32 = vld [vmem:[%s1 + $0x2c] sm:$0xf]
  %v33 = vld [vmem:[%s1 + $0x30] sm:$0xf]
  %v34 = vld [vmem:[%s1 + $0x34] sm:$0xf]
  %v35 = vld [vmem:[%s1 + $0x38] sm:$0xf]
  %v36 = vld [vmem:[%s1 + $0x3c] sm:$0xf]
  %v37 = vld [vmem:[%s2] sm:$0x1]
  %v39 = vlaneseq
  %v40 = vshrl.u32 %v39, 7
  %v41 = vsub.s32 0, %v40
  %v42 = vrot.slane %v37, %v41
  %v47 = vunpack.c.l.b16 %v18
  %v48 = vunpack.c.l.b16 %v19
  %v49 = vunpack.c.l.b16 %v20
  %v50 = vpack.c.b16 %v48, %v47
  %v51 = vpack.c.b16 %v49, %v49
  %v70 = vunpack.c.l.b16 %v21
  %v71 = vunpack.c.l.b16 %v22
  %v72 = vunpack.c.l.b16 %v23
  %v73 = vunpack.c.l.b16 %v24
  %v74 = vunpack.c.l.b16 %v25
  %v75 = vunpack.c.l.b16 %v26
  %v76 = vunpack.c.l.b16 %v27
  %v77 = vunpack.c.l.b16 %v28
  %v78 = vunpack.c.l.b16 %v29
  %v79 = vunpack.c.l.b16 %v30
  %v80 = vunpack.c.l.b16 %v31
  %v81 = vunpack.c.l.b16 %v32
  %v82 = vunpack.c.l.b16 %v33
  %v83 = vunpack.c.l.b16 %v34
  %v84 = vunpack.c.l.b16 %v35
  %v85 = vunpack.c.l.b16 %v36
  %v86 = vpack.c.b16 %v71, %v70
  %v87 = vpack.c.b16 %v73, %v72
  %v88 = vpack.c.b16 %v75, %v74
  %v89 = vpack.c.b16 %v77, %v76
  %v90 = vpack.c.b16 %v79, %v78
  %v91 = vpack.c.b16 %v81, %v80
  %v92 = vpack.c.b16 %v83, %v82
  %v93 = vpack.c.b16 %v85, %v84
  %102 = vmatprep.subr.bf16.mxu0 0
  %103 = vmatpush1.bf16.msra.mxu0 %v93
  %104 = vmatprep.subr.bf16.mxu0 0
  %105 = vmatpush1.bf16.msra.mxu0 %v92
  %106 = vmatprep.subr.bf16.mxu0 0
  %107 = vmatpush1.bf16.msra.mxu0 %v91
  %108 = vmatprep.subr.bf16.mxu0 0
  %109 = vmatpush1.bf16.msra.mxu0 %v90
  %110 = vmatprep.subr.bf16.mxu0 0
  %111 = vmatpush1.bf16.msra.mxu0 %v89
  %112 = vmatprep.subr.bf16.mxu0 0
  %113 = vmatpush1.bf16.msra.mxu0 %v88
  %114 = vmatprep.subr.bf16.mxu0 0
  %115 = vmatpush1.bf16.msra.mxu0 %v87
  %116 = vmatprep.subr.bf16.mxu0 0
  %117 = vmatpush1.bf16.msra.mxu0 %v86
  %118 = vmatprep.subr.bf16.mxu0 0
  %119 = vmatpush2.bf16.msra.mxu0 0
  %120 = vmatprep.subr.bf16.mxu0 0
  %121 = vmatpush2.bf16.msra.mxu0 0
  %122 = vmatprep.subr.bf16.mxu0 0
  %123 = vmatpush2.bf16.msra.mxu0 0
  %124 = vmatprep.subr.bf16.mxu0 0
  %125 = vmatpush2.bf16.msra.mxu0 0
  %126 = vmatprep.subr.bf16.mxu0 0
  %127 = vmatpush2.bf16.msra.mxu0 0
  %128 = vmatprep.subr.bf16.mxu0 0
  %129 = vmatpush2.bf16.msra.mxu0 0
  %130 = vmatprep.subr.bf16.mxu0 0
  %131 = vmatpush2.bf16.msra.mxu0 0
  %132 = vmatprep.subr.bf16.mxu0 0
  %133 = vmatpush2.bf16.msra.mxu0 0
  %134 = vmatprep.mubr.bf16.mxu0 0
  %135 = vmatmul.mubr.bf16.gmra.mxu0 %v50
  %v136 = vpop.f32.mrf.mxu0
  %v137 = vadd.f32 %v42, %v136
  %v138 = vpop.f32.mrf.mxu0
  %v139 = vpop.f32.mrf.mxu0
  %v140 = vadd.f32 %v42, %v139
  %v141 = vpop.f32.mrf.mxu0
  %142 = vmatprep.mubr.bf16.mxu0 0
  %143 = vmatmul.mubr.bf16.gmra.mxu0 %v51
  %v144 = vpop.f32.mrf.mxu0
  %v145 = vadd.f32 %v42, %v144
  %v146 = vpop.f32.mrf.mxu0
  %v147 = vpop.f32.mrf.mxu0
  %v148 = vpop.f32.mrf.mxu0
  %149 = vdwg.mxu0
  %v150 = vld [vmem:[%s3] sm:$0xf]
  %v151 = vld [vmem:[%s3 + $0x4] sm:$0xf]
  %v152 = vld [vmem:[%s3 + $0x8] sm:$0xf]
  %v153 = vunpack.c.l.bf16 %v150
  %v154 = vunpack.c.l.bf16 %v151
  %v155 = vunpack.c.l.bf16 %v152
  %v156 = vadd.f32 %v137, %v153
  %v157 = vadd.f32 %v140, %v154
  %v158 = vadd.f32 %v145, %v155
  %v159 = vpack.c.bf16 %v157, %v156
  %v160 = vpack.c.bf16 %v158, %v158
  %v163 = vunpack.c.l.b16 %v159
  %v164 = vunpack.c.h.b16 %v159
  %v165 = vunpack.c.l.b16 %v160
  %v166 = vpack.c.b16 %v163, %v163
  %v167 = vpack.c.b16 %v164, %v164
  %v168 = vpack.c.b16 %v165, %v165
  %172 = vst [vmem:[%s4] sm:$0xf] %v166
  %173 = vst [vmem:[%s4 + $0x4] sm:$0xf] %v167
  %174 = vst [vmem:[%s4 + $0x8] sm:$0xf] %v168
  // Predicated region
  $region18: #{_lambda_.15} parent=0 // pred_check
    _
  $region19: #{_lambda_.15} parent=0 // pred_check_branch
    %176 = sbr.rel (0) target = $region21
  $region20: #{_lambda_.15} parent=0 // pred_region
    _
  $region21: #{_lambda_.15} parent=0 // pred_fallthru
    _
  // Predicated region
  $region22: #{_lambda_.15} parent=0 // pred_check
    _
  $region23: #{_lambda_.15} parent=0 // pred_check_branch
    %178 = sbr.rel (0) target = $region25
  $region24: #{_lambda_.15} parent=0 // pred_region
    _
  $region25: #{_lambda_.15} parent=0 // pred_fallthru
    _

// kernel: _lambda_.16
$region0: #{_lambda_.16}
  #allocation0 [shape = 'u32[]', space=smem, size = 0x4, offset = 0x4, fixed_abs, tag = 'smem constant byte address 0x4 - core index']
  #allocation1 [shape = 'u32[144,128]{1,0:T(1,128)}', space=vmem, size = 0x12000, scoped, tag = 'internal scratch']
  #allocation2 [shape = 'bf16[24,32]{1,0:T(8,128)(2,1)}', space=vmem, size = 0x1800, scoped, tag = 'scratch operand']
  %s0 = inlined_call_operand.vmem [shape: bf16[24,32], index: 0, kind: input, shape index: {}]
  %s1 = inlined_call_operand.vmem [shape: bf16[32,128], index: 1, kind: input, shape index: {}]
  %s2 = inlined_call_operand.vmem [shape: f32[1,128], index: 2, kind: input, shape index: {}]
  %s3 = inlined_call_operand.vmem [shape: f32[1,32], index: 3, kind: input, shape index: {}]
  %s4 = inlined_call_operand.vmem [shape: f32[1,32], index: 4, kind: input, shape index: {}]
  %s5 = inlined_call_operand.vmem [shape: bf16[24,128], index: 5, kind: output, shape index: {}]
  %s6 = sld [smem:[#allocation0]]
  $region34: #{_lambda_.16} parent=0
    _
  %s8 = ssub.s32 1, %s6
  %s9 = scalar_select 0, %s8, %s6
  // Predicated region
  $region2: #{_lambda_.16} parent=0 // pred_check
    _
  $region3: #{_lambda_.16} parent=0 // pred_check_branch
    %11 = sbr.rel (0) target = $region5
  $region4: #{_lambda_.16} parent=0 // pred_region
    _
  $region5: #{_lambda_.16} parent=0 // pred_fallthru
    _
  // Predicated region
  $region6: #{_lambda_.16} parent=0 // pred_check
    _
  $region7: #{_lambda_.16} parent=0 // pred_check_branch
    %13 = sbr.rel (0) target = $region9
  $region8: #{_lambda_.16} parent=0 // pred_region
    _
  $region9: #{_lambda_.16} parent=0 // pred_fallthru
    _
  // Predicated region
  $region10: #{_lambda_.16} parent=0 // pred_check
    _
  $region11: #{_lambda_.16} parent=0 // pred_check_branch
    %15 = sbr.rel (0) target = $region13
  $region12: #{_lambda_.16} parent=0 // pred_region
    _
  $region13: #{_lambda_.16} parent=0 // pred_fallthru
    _
  // Predicated region
  $region14: #{_lambda_.16} parent=0 // pred_check
    _
  $region15: #{_lambda_.16} parent=0 // pred_check_branch
    %17 = sbr.rel (0) target = $region17
  $region16: #{_lambda_.16} parent=0 // pred_region
    _
  $region17: #{_lambda_.16} parent=0 // pred_fallthru
    _
  // Predicated region
  $region18: #{_lambda_.16} parent=0 // pred_check
    _
  $region19: #{_lambda_.16} parent=0 // pred_check_branch
    %19 = sbr.rel (0) target = $region21
  $region20: #{_lambda_.16} parent=0 // pred_region
    _
  $region21: #{_lambda_.16} parent=0 // pred_fallthru
    _
  %p21 = scmp.eq.s32.totalorder 0, 0
  // Predicated region
  $region22: #{_lambda_.16} parent=0 // pred_check
    %p22 = pneg %p21
  $region23: #{_lambda_.16} parent=0 // pred_check_branch
    %24 = sbr.rel (%p22) target = $region25
  $region24: #{_lambda_.16} parent=0 // pred_region
    %v25 = vld [vmem:[%s0] sm:$0xf]
    %v26 = vld [vmem:[%s0 + $0x4] sm:$0xf]
    %v27 = vld [vmem:[%s0 + $0x8] sm:$0xf]
    %v28 = vunpack.c.l.bf16 %v25
    %v29 = vunpack.c.l.bf16 %v26
    %v30 = vunpack.c.l.bf16 %v27
    %vm31 = vcmask 261120
    %v32 = vsel %vm31, %v28, 0.0
    %33 = vadd.xlane.f32.xlu0 %v32
    %v34 = vpop.xlane.xlu0 %33
    %v35 = vsel %vm31, %v29, 0.0
    %36 = vadd.xlane.f32.xlu0 %v35
    %v37 = vpop.xlane.xlu0 %36
    %v38 = vsel %vm31, %v30, 0.0
    %39 = vadd.xlane.f32.xlu0 %v38
    %v40 = vpop.xlane.xlu0 %39
    %v41 = vrcp.pop 32.0
    %v42 = vmul.f32 %v34, %v41
    %v43 = vmul.f32 %v37, %v41
    %v44 = vmul.f32 %v40, %v41
    %v45 = vsub.f32 %v28, %v42
    %v46 = vsub.f32 %v29, %v43
    %v47 = vsub.f32 %v30, %v44
    %v48 = vmul.f32 %v45, %v45
    %v49 = vmul.f32 %v46, %v46
    %v50 = vmul.f32 %v47, %v47
    %v51 = vsel %vm31, %v48, 0.0
    %52 = vadd.xlane.f32.xlu0 %v51
    %v53 = vpop.xlane.xlu0 %52
    %v54 = vsel %vm31, %v49, 0.0
    %55 = vadd.xlane.f32.xlu0 %v54
    %v56 = vpop.xlane.xlu0 %55
    %v57 = vsel %vm31, %v50, 0.0
    %58 = vadd.xlane.f32.xlu0 %v57
    %v59 = vpop.xlane.xlu0 %58
    %v60 = vmul.f32 %v53, %v41
    %v61 = vmul.f32 %v56, %v41
    %v62 = vmul.f32 %v59, %v41
    %v63 = vadd.f32 %v60, 1e-06
    %v64 = vadd.f32 %v61, 1e-06
    %v65 = vadd.f32 %v62, 1e-06
    %v66 = vrsqrt.pop %v63
    %v67 = vrsqrt.pop %v64
    %v68 = vrsqrt.pop %v65
    %v69 = vmul.f32 %v45, %v66
    %v70 = vmul.f32 %v46, %v67
    %v71 = vmul.f32 %v47, %v68
    %v72 = vld [vmem:[%s3] sm:$0x1]
    %v74 = vlaneseq
    %v75 = vshrl.u32 %v74, 7
    %v76 = vsub.s32 0, %v75
    %v77 = vrot.slane %v72, %v76
    %v79 = vmul.f32 %v69, %v77
    %v80 = vmul.f32 %v70, %v77
    %v81 = vmul.f32 %v71, %v77
    %v82 = vld [vmem:[%s4] sm:$0x1]
    %v84 = vlaneseq
    %v85 = vshrl.u32 %v84, 7
    %v86 = vsub.s32 0, %v85
    %v87 = vrot.slane %v82, %v86
    %v89 = vadd.f32 %v79, %v87
    %v90 = vadd.f32 %v80, %v87
    %v91 = vadd.f32 %v81, %v87
    %v92 = vpack.c.bf16 %v90, %v89
    %v93 = vpack.c.bf16 %v91, %v91
    %v96 = vunpack.c.l.b16 %v92
    %v97 = vunpack.c.h.b16 %v92
    %v98 = vunpack.c.l.b16 %v93
    %v99 = vpack.c.b16 %v96, %v96
    %v100 = vpack.c.b16 %v97, %v97
    %v101 = vpack.c.b16 %v98, %v98
    %vm105 = vcmask 257024
    %106 = vst.msk [vmem:[#allocation2] sm:$0xf] %vm105, %v99
    %107 = vst.msk [vmem:[#allocation2 + $0x4] sm:$0xf] %vm105, %v100
    %108 = vst.msk [vmem:[#allocation2 + $0x8] sm:$0xf] %vm105, %v101
  $region25: #{_lambda_.16} parent=0 // pred_fallthru
    _
  %v109 = vld [vmem:[#allocation2] sm:$0xf]
  %v110 = vld [vmem:[#allocation2 + $0x4] sm:$0xf]
  %v111 = vld [vmem:[#allocation2 + $0x8] sm:$0xf]
  %v112 = vld [vmem:[%s1] sm:$0xf]
  %v113 = vld [vmem:[%s1 + $0x4] sm:$0xf]
  %v114 = vld [vmem:[%s1 + $0x8] sm:$0xf]
  %v115 = vld [vmem:[%s1 + $0xc] sm:$0xf]
  %v116 = vld [vmem:[%s2] sm:$0x1]
  %v118 = vlaneseq
  %v119 = vshrl.u32 %v118, 7
  %v120 = vsub.s32 0, %v119
  %v121 = vrot.slane %v116, %v120
  %v126 = vunpack.c.l.b16 %v109
  %v127 = vunpack.c.l.b16 %v110
  %v128 = vunpack.c.l.b16 %v111
  %v129 = vpack.c.b16 %v127, %v126
  %v130 = vpack.c.b16 %v128, %v128
  %v135 = vunpack.c.l.b16 %v112
  %v136 = vunpack.c.l.b16 %v113
  %v137 = vunpack.c.l.b16 %v114
  %v138 = vunpack.c.l.b16 %v115
  %v139 = vpack.c.b16 %v136, %v135
  %v140 = vpack.c.b16 %v138, %v137
  %vm143 = vcmask 261120
  %v145 = vsel %vm143, %v129, 0
  %v148 = vsel %vm143, %v130, 0
  %150 = vmatprep.subr.bf16.mxu0 0
  %151 = vmatpush1.bf16.msra.mxu0 0
  %152 = vmatprep.subr.bf16.mxu0 0
  %153 = vmatpush1.bf16.msra.mxu0 0
  %154 = vmatprep.subr.bf16.mxu0 0
  %155 = vmatpush1.bf16.msra.mxu0 0
  %156 = vmatprep.subr.bf16.mxu0 0
  %157 = vmatpush1.bf16.msra.mxu0 0
  %158 = vmatprep.subr.bf16.mxu0 0
  %159 = vmatpush1.bf16.msra.mxu0 0
  %160 = vmatprep.subr.bf16.mxu0 0
  %161 = vmatpush1.bf16.msra.mxu0 0
  %162 = vmatprep.subr.bf16.mxu0 0
  %163 = vmatpush1.bf16.msra.mxu0 %v140
  %164 = vmatprep.subr.bf16.mxu0 0
  %165 = vmatpush1.bf16.msra.mxu0 %v139
  %166 = vmatprep.subr.bf16.mxu0 0
  %167 = vmatpush2.bf16.msra.mxu0 0
  %168 = vmatprep.subr.bf16.mxu0 0
  %169 = vmatpush2.bf16.msra.mxu0 0
  %170 = vmatprep.subr.bf16.mxu0 0
  %171 = vmatpush2.bf16.msra.mxu0 0
  %172 = vmatprep.subr.bf16.mxu0 0
  %173 = vmatpush2.bf16.msra.mxu0 0
  %174 = vmatprep.subr.bf16.mxu0 0
  %175 = vmatpush2.bf16.msra.mxu0 0
  %176 = vmatprep.subr.bf16.mxu0 0
  %177 = vmatpush2.bf16.msra.mxu0 0
  %178 = vmatprep.subr.bf16.mxu0 0
  %179 = vmatpush2.bf16.msra.mxu0 0
  %180 = vmatprep.subr.bf16.mxu0 0
  %181 = vmatpush2.bf16.msra.mxu0 0
  %182 = vmatprep.mubr.bf16.mxu0 0
  %183 = vmatmul.mubr.bf16.gmra.mxu0 %v145
  %v184 = vpop.f32.mrf.mxu0
  %v185 = vadd.f32 %v121, %v184
  %v186 = vpop.f32.mrf.mxu0
  %v187 = vpop.f32.mrf.mxu0
  %v188 = vadd.f32 %v121, %v187
  %v189 = vpop.f32.mrf.mxu0
  %190 = vmatprep.mubr.bf16.mxu0 0
  %191 = vmatmul.mubr.bf16.gmra.mxu0 %v148
  %v192 = vpop.f32.mrf.mxu0
  %v193 = vadd.f32 %v121, %v192
  %v194 = vpop.f32.mrf.mxu0
  %v195 = vpop.f32.mrf.mxu0
  %v196 = vpop.f32.mrf.mxu0
  %197 = vdwg.mxu0
  %v198 = vmul.f32 %v185, 0.5
  %v199 = vmul.f32 %v188, 0.5
  %v200 = vmul.f32 %v193, 0.5
  %v201 = vmul.f32 %v185, 0.044715
  %v202 = vmul.f32 %v188, 0.044715
  %v203 = vmul.f32 %v193, 0.044715
  %v204 = vmul.f32 %v201, %v185
  %v205 = vmul.f32 %v202, %v188
  %v206 = vmul.f32 %v203, %v193
  %v207 = vmul.f32 %v204, %v185
  %v208 = vmul.f32 %v205, %v188
  %v209 = vmul.f32 %v206, %v193
  %v210 = vadd.f32 %v185, %v207
  %v211 = vadd.f32 %v188, %v208
  %v212 = vadd.f32 %v193, %v209
  %v213 = vmul.f32 %v210, 0.7978846
  %v214 = vmul.f32 %v211, 0.7978846
  %v215 = vmul.f32 %v212, 0.7978846
  %v216 = vtanh.pop %v213
  %v217 = vtanh.pop %v214
  %v218 = vtanh.pop %v215
  %v219 = vadd.f32 %v216, 1.0
  %v220 = vadd.f32 %v217, 1.0
  %v221 = vadd.f32 %v218, 1.0
  %v222 = vmul.f32 %v198, %v219
  %v223 = vmul.f32 %v199, %v220
  %v224 = vmul.f32 %v200, %v221
  %v225 = vpack.c.bf16 %v223, %v222
  %v226 = vpack.c.bf16 %v224, %v224
  %v229 = vunpack.c.l.b16 %v225
  %v230 = vunpack.c.h.b16 %v225
  %v231 = vunpack.c.l.b16 %v226
  %v232 = vpack.c.b16 %v229, %v229
  %v233 = vpack.c.b16 %v230, %v230
  %v234 = vpack.c.b16 %v231, %v231
  %238 = vst [vmem:[%s5] sm:$0xf] %v232
  %239 = vst [vmem:[%s5 + $0x4] sm:$0xf] %v233
  %240 = vst [vmem:[%s5 + $0x8] sm:$0xf] %v234
  // Predicated region
  $region26: #{_lambda_.16} parent=0 // pred_check
    _
  $region27: #{_lambda_.16} parent=0 // pred_check_branch
    %242 = sbr.rel (0) target = $region29
  $region28: #{_lambda_.16} parent=0 // pred_region
    _
  $region29: #{_lambda_.16} parent=0 // pred_fallthru
    _
  // Predicated region
  $region30: #{_lambda_.16} parent=0 // pred_check
    _
  $region31: #{_lambda_.16} parent=0 // pred_check_branch
    %244 = sbr.rel (0) target = $region33
  $region32: #{_lambda_.16} parent=0 // pred_region
    _
  $region33: #{_lambda_.16} parent=0 // pred_fallthru
    _

// kernel: _lambda_.14
$region0: #{_lambda_.14}
  #allocation0 [shape = 'u32[]', space=smem, size = 0x4, offset = 0x4, fixed_abs, tag = 'smem constant byte address 0x4 - core index']
  #allocation1 [shape = 'u32[144,128]{1,0:T(1,128)}', space=vmem, size = 0x12000, scoped, tag = 'internal scratch']
  #allocation2 [shape = 'f32[4,16,1]{2,1,0:T(8,128)}', space=vmem, size = 0x8000, scoped, tag = 'scratch operand']
  #allocation3 [shape = 'f32[4,16,1]{2,1,0:T(8,128)}', space=vmem, size = 0x8000, scoped, tag = 'scratch operand']
  #allocation4 [shape = 'f32[4,16,8]{2,1,0:T(8,128)}', space=vmem, size = 0x8000, scoped, tag = 'scratch operand']
  %s0 = inlined_call_operand.vmem [shape: bf16[2,4,16,8], index: 0, kind: input, shape index: {}]
  %s1 = inlined_call_operand.vmem [shape: bf16[2,4,16,8], index: 1, kind: input, shape index: {}]
  %s2 = inlined_call_operand.vmem [shape: bf16[2,4,16,8], index: 2, kind: input, shape index: {}]
  %s3 = inlined_call_operand.vmem [shape: bf16[2,4,16,8], index: 3, kind: output, shape index: {}]
  %s4 = sld [smem:[#allocation0]]
  $region53: #{_lambda_.14} parent=0
    _
  %s6 = ssub.s32 1, %s4
  %s7 = scalar_select 0, %s6, %s4
  loop: start=0, step=1, limit=4
  $region2: #{_lambda_.14} parent=0 // loop_pre_header
    _
  $region3: #{_lambda_.14} parent=0 // loop_header
    %s9 = sphi 0, %s13
    %p10 = scmp.ge.s32.totalorder %s9, 4
    %s16 = sphi 0, %s35
    %s17 = sphi 0, %s31
    %s18 = sphi 0, %s27
    %s19 = sphi 0, %s16
    %s20 = sphi 0, %s17
    %s21 = sphi 0, %s18
    %s22 = sphi 0, %s19
    %s23 = sphi 0, %s20
    %s24 = sphi 0, %s21
    %s40 = sphi 0, %s42
    %s43 = sphi 0, %s40
    %s44 = sphi 0, %s43
    %s60 = sphi 0, %s44
    %s68 = sphi 0, %s70
    %s71 = sphi 0, %s68
    %s72 = sphi 0, %s71
    %s88 = sphi 0, %s72
    %s96 = sphi 0, %s98
    %s99 = sphi 0, %s96
    %s100 = sphi 0, %s99
    %s116 = sphi 0, %s100
    %s124 = sphi 0, %s126
    %s127 = sphi 0, %s124
    %s128 = sphi 0, %s127
    %s144 = sphi 0, %s128
  $region4: #{_lambda_.14} parent=0 // loop_header_branch
    %12 = sbr.rel (%p10) target = $region8
  $region5: #{_lambda_.14} parent=0 // loop_body
    %s14 = ssub.s32 %s9, 1
    %s15 = ssub.s32 %s9, 2
    %s25 = sadd.s32 1, %s18
    %p26 = scmp.ge.s32.totalorder %s25, 1
    %s27 = scalar_select %p26, 0, %s25
    %s28 = sadd.s32 1, %s17
    %s29 = scalar_select %p26, %s28, %s17
    %p30 = scmp.ge.s32.totalorder %s29, 1
    %s31 = scalar_select %p30, 0, %s29
    %s32 = sadd.s32 1, %s16
    %s33 = scalar_select %p30, %s32, %s16
    %p34 = scmp.ge.s32.totalorder %s33, 2
    %s35 = scalar_select %p34, 0, %s33
    %s36 = ssub.s32 %s16, %s35
    %s37 = ssub.s32 %s17, %s31
    %s38 = sor.u32 %s36, %s37
    %p39 = scmp.eq.s32.totalorder %s38, 0
    %s41 = sadd.s32 %s40, 1
    %s42 = scalar_select %p39, %s40, %s41
    %p45 = pneg %p39
    %p46 = scmp.eq.s32.totalorder %s9, 1
    %p47 = por %p45, %p46
    %p48 = scmp.ne.s32.totalorder %s40, %s43
    %p49 = scmp.eq.s32.totalorder %s9, 0
    %p50 = por %p48, %p49
    %p51 = scmp.ne.s32.totalorder %s40, %s43
    %p52 = scmp.eq.s32.totalorder %s14, 1
    %p53 = por %p51, %p52
    %p54 = scmp.ne.s32.totalorder %s43, %s44
    %p55 = scmp.eq.s32.totalorder %s14, 0
    %p56 = por %p54, %p55
    %p57 = scmp.ne.s32.totalorder %s43, %s44
    %p58 = scmp.eq.s32.totalorder %s15, 1
    %p59 = por %p57, %p58
    %p61 = scmp.ne.s32.totalorder %s44, %s60
    %p62 = scmp.eq.s32.totalorder %s15, 0
    %p63 = por %p61, %p62
    %s64 = ssub.s32 %s16, %s35
    %s65 = ssub.s32 %s18, %s27
    %s66 = sor.u32 %s64, %s65
    %p67 = scmp.eq.s32.totalorder %s66, 0
    %s69 = sadd.s32 %s68, 1
    %s70 = scalar_select %p67, %s68, %s69
    %p73 = pneg %p67
    %p74 = scmp.eq.s32.totalorder %s9, 1
    %p75 = por %p73, %p74
    %p76 = scmp.ne.s32.totalorder %s68, %s71
    %p77 = scmp.eq.s32.totalorder %s9, 0
    %p78 = por %p76, %p77
    %p79 = scmp.ne.s32.totalorder %s68, %s71
    %p80 = scmp.eq.s32.totalorder %s14, 1
    %p81 = por %p79, %p80
    %p82 = scmp.ne.s32.totalorder %s71, %s72
    %p83 = scmp.eq.s32.totalorder %s14, 0
    %p84 = por %p82, %p83
    %p85 = scmp.ne.s32.totalorder %s71, %s72
    %p86 = scmp.eq.s32.totalorder %s15, 1
    %p87 = por %p85, %p86
    %p89 = scmp.ne.s32.totalorder %s72, %s88
    %p90 = scmp.eq.s32.totalorder %s15, 0
    %p91 = por %p89, %p90
    %s92 = ssub.s32 %s16, %s35
    %s93 = ssub.s32 %s18, %s27
    %s94 = sor.u32 %s92, %s93
    %p95 = scmp.eq.s32.totalorder %s94, 0
    %s97 = sadd.s32 %s96, 1
    %s98 = scalar_select %p95, %s96, %s97
    %p101 = pneg %p95
    %p102 = scmp.eq.s32.totalorder %s9, 1
    %p103 = por %p101, %p102
    %p104 = scmp.ne.s32.totalorder %s96, %s99
    %p105 = scmp.eq.s32.totalorder %s9, 0
    %p106 = por %p104, %p105
    %p107 = scmp.ne.s32.totalorder %s96, %s99
    %p108 = scmp.eq.s32.totalorder %s14, 1
    %p109 = por %p107, %p108
    %p110 = scmp.ne.s32.totalorder %s99, %s100
    %p111 = scmp.eq.s32.totalorder %s14, 0
    %p112 = por %p110, %p111
    %p113 = scmp.ne.s32.totalorder %s99, %s100
    %p114 = scmp.eq.s32.totalorder %s15, 1
    %p115 = por %p113, %p114
    %p117 = scmp.ne.s32.totalorder %s100, %s116
    %p118 = scmp.eq.s32.totalorder %s15, 0
    %p119 = por %p117, %p118
    %s120 = ssub.s32 %s16, %s35
    %s121 = ssub.s32 %s17, %s31
    %s122 = sor.u32 %s120, %s121
    %p123 = scmp.eq.s32.totalorder %s122, 0
    %s125 = sadd.s32 %s124, 1
    %s126 = scalar_select %p123, %s124, %s125
    %p129 = pneg %p123
    %p130 = scmp.eq.s32.totalorder %s9, 1
    %p131 = por %p129, %p130
    %p132 = scmp.ne.s32.totalorder %s124, %s127
    %p133 = scmp.eq.s32.totalorder %s9, 0
    %p134 = por %p132, %p133
    %p135 = scmp.ne.s32.totalorder %s124, %s127
    %p136 = scmp.eq.s32.totalorder %s14, 1
    %p137 = por %p135, %p136
    %p138 = scmp.ne.s32.totalorder %s127, %s128
    %p139 = scmp.eq.s32.totalorder %s14, 0
    %p140 = por %p138, %p139
    %p141 = scmp.ne.s32.totalorder %s127, %s128
    %p142 = scmp.eq.s32.totalorder %s15, 1
    %p143 = por %p141, %p142
    %p145 = scmp.ne.s32.totalorder %s128, %s144
    %p146 = scmp.eq.s32.totalorder %s15, 0
    %p147 = por %p145, %p146
    %p148 = scmp.le.s32.totalorder 1, %s9
    %p149 = scmp.lt.s32.totalorder %s9, 3
    %p150 = pnand %p148, %p149
    %p151 = pneg %p150
    // Predicated region
    $region9: #{_lambda_.14} parent=5 // pred_check
      _
    $region10: #{_lambda_.14} parent=5 // pred_check_branch
      %153 = sbr.rel (%p150) target = $region12
    $region11: #{_lambda_.14} parent=5 // pred_region
      %s154 = ssub.s32 %s9, 1
    $region12: #{_lambda_.14} parent=5 // pred_fallthru
      _
    %p155 = scmp.lt.s32.totalorder %s9, 2
    // Predicated region
    $region13: #{_lambda_.14} parent=5 // pred_check
      %p156 = pneg %p155
    $region14: #{_lambda_.14} parent=5 // pred_check_branch
      %158 = sbr.rel (%p156) target = $region16
    $region15: #{_lambda_.14} parent=5 // pred_region
      // Predicated region
      $region17: #{_lambda_.14} parent=15 // pred_check
        %p159 = pneg %p50
      $region18: #{_lambda_.14} parent=15 // pred_check_branch
        %161 = sbr.rel (%p159) target = $region20
      $region19: #{_lambda_.14} parent=15 // pred_region
        %s162 = smul.u32 2, %s17
        %p163 = scmp.lt.s32.totalorder %s16, 1
        %s164 = scalar_select %p163, %s16, 1
        %p165 = scmp.lt.s32.totalorder %s162, 1
        %s166 = scalar_select %p165, %s162, 1
        %s167 = smul.addr %s164, 8
        %s168 = sadd.s32 %s166, %s167
        %s169 = smul.addr %s168, 4
        %s170 = scalar_lea.vmem %s0, %s169
        %s171 = smul.u32 2, %s17
      $region20: #{_lambda_.14} parent=15 // pred_fallthru
        _
      // Predicated region
      $region21: #{_lambda_.14} parent=15 // pred_check
        %p172 = pneg %p78
      $region22: #{_lambda_.14} parent=15 // pred_check_branch
        %174 = sbr.rel (%p172) target = $region24
      $region23: #{_lambda_.14} parent=15 // pred_region
        %s175 = smul.u32 2, %s18
        %p176 = scmp.lt.s32.totalorder %s16, 1
        %s177 = scalar_select %p176, %s16, 1
        %p178 = scmp.lt.s32.totalorder %s175, 1
        %s179 = scalar_select %p178, %s175, 1
        %s180 = smul.addr %s177, 8
        %s181 = sadd.s32 %s179, %s180
        %s182 = smul.addr %s181, 4
        %s183 = scalar_lea.vmem %s1, %s182
        %s184 = smul.u32 2, %s18
      $region24: #{_lambda_.14} parent=15 // pred_fallthru
        _
      // Predicated region
      $region25: #{_lambda_.14} parent=15 // pred_check
        %p185 = pneg %p106
      $region26: #{_lambda_.14} parent=15 // pred_check_branch
        %187 = sbr.rel (%p185) target = $region28
      $region27: #{_lambda_.14} parent=15 // pred_region
        %s188 = smul.u32 2, %s18
        %p189 = scmp.lt.s32.totalorder %s16, 1
        %s190 = scalar_select %p189, %s16, 1
        %p191 = scmp.lt.s32.totalorder %s188, 1
        %s192 = scalar_select %p191, %s188, 1
        %s193 = smul.addr %s190, 8
        %s194 = sadd.s32 %s192, %s193
        %s195 = smul.addr %s194, 4
        %s196 = scalar_lea.vmem %s2, %s195
        %s197 = smul.u32 2, %s18
      $region28: #{_lambda_.14} parent=15 // pred_fallthru
        _
    $region16: #{_lambda_.14} parent=5 // pred_fallthru
      _
    %p198 = scmp.le.s32.totalorder 1, %s9
    %p199 = scmp.lt.s32.totalorder %s9, 3
    %p200 = pnand %p198, %p199
    %p201 = pneg %p200
    // Predicated region
    $region29: #{_lambda_.14} parent=5 // pred_check
      _
    $region30: #{_lambda_.14} parent=5 // pred_check_branch
      %203 = sbr.rel (%p200) target = $region32
    $region31: #{_lambda_.14} parent=5 // pred_region
      %s204 = ssub.s32 %s9, 1
      %s205 = smul.u32 2, %s20
      %p206 = scmp.lt.s32.totalorder %s19, 1
      %s207 = scalar_select %p206, %s19, 1
      %p208 = scmp.lt.s32.totalorder %s205, 1
      %s209 = scalar_select %p208, %s205, 1
      %s210 = smul.addr %s207, 8
      %s211 = sadd.s32 %s209, %s210
      %s212 = smul.addr %s211, 4
      %s213 = scalar_lea.vmem %s0, %s212
      %p214 = pneg %p56
      %p215 = pneg %p53
      %s216 = smul.u32 2, %s21
      %p217 = scmp.lt.s32.totalorder %s19, 1
      %s218 = scalar_select %p217, %s19, 1
      %p219 = scmp.lt.s32.totalorder %s216, 1
      %s220 = scalar_select %p219, %s216, 1
      %s221 = smul.addr %s218, 8
      %s222 = sadd.s32 %s220, %s221
      %s223 = smul.addr %s222, 4
      %s224 = scalar_lea.vmem %s1, %s223
      %p225 = pneg %p84
      %p226 = pneg %p81
      %s227 = smul.u32 2, %s21
      %p228 = scmp.lt.s32.totalorder %s19, 1
      %s229 = scalar_select %p228, %s19, 1
      %p230 = scmp.lt.s32.totalorder %s227, 1
      %s231 = scalar_select %p230, %s227, 1
      %s232 = smul.addr %s229, 8
      %s233 = sadd.s32 %s231, %s232
      %s234 = smul.addr %s233, 4
      %s235 = scalar_lea.vmem %s2, %s234
      %p236 = pneg %p112
      %p237 = pneg %p109
      %p238 = pneg %p140
      %p239 = pneg %p137
      %s240 = smul.u32 2, %s20
      %p241 = scmp.lt.s32.totalorder %s19, 1
      %s242 = scalar_select %p241, %s19, 1
      %p243 = scmp.lt.s32.totalorder %s240, 1
      %s244 = scalar_select %p243, %s240, 1
      %s245 = smul.addr %s242, 8
      %s246 = sadd.s32 %s244, %s245
      %s247 = smul.addr %s246, 4
      %s248 = scalar_lea.vmem %s3, %s247
      %s249 = smul.u32 2, %s20
      %p250 = scmp.lt.s32.totalorder %s19, 1
      %s251 = scalar_select %p250, %s19, 1
      %p252 = scmp.lt.s32.totalorder %s249, 1
      %s253 = scalar_select %p252, %s249, 1
      %s254 = smul.addr %s251, 8
      %s255 = sadd.s32 %s253, %s254
      %s256 = smul.addr %s255, 4
      %s257 = scalar_lea.vmem %s0, %s256
      %s258 = smul.u32 2, %s20
      %s259 = smul.u32 2, %s21
      %p260 = scmp.lt.s32.totalorder %s19, 1
      %s261 = scalar_select %p260, %s19, 1
      %p262 = scmp.lt.s32.totalorder %s259, 1
      %s263 = scalar_select %p262, %s259, 1
      %s264 = smul.addr %s261, 8
      %s265 = sadd.s32 %s263, %s264
      %s266 = smul.addr %s265, 4
      %s267 = scalar_lea.vmem %s1, %s266
      %s268 = smul.u32 2, %s21
      %s269 = smul.u32 2, %s21
      %p270 = scmp.lt.s32.totalorder %s19, 1
      %s271 = scalar_select %p270, %s19, 1
      %p272 = scmp.lt.s32.totalorder %s269, 1
      %s273 = scalar_select %p272, %s269, 1
      %s274 = smul.addr %s271, 8
      %s275 = sadd.s32 %s273, %s274
      %s276 = smul.addr %s275, 4
      %s277 = scalar_lea.vmem %s2, %s276
      %s278 = smul.u32 2, %s21
      %s279 = smul.u32 2, %s20
      %p280 = scmp.lt.s32.totalorder %s19, 1
      %s281 = scalar_select %p280, %s19, 1
      %p282 = scmp.lt.s32.totalorder %s279, 1
      %s283 = scalar_select %p282, %s279, 1
      %s284 = smul.addr %s281, 8
      %s285 = sadd.s32 %s283, %s284
      %s286 = smul.addr %s285, 4
      %s287 = scalar_lea.vmem %s3, %s286
      %s288 = smul.u32 2, %s20
      %p290 = scmp.eq.s32.totalorder %s21, 0
      // Predicated region
      $region33: #{_lambda_.14} parent=31 // pred_check
        %p291 = pneg %p290
      $region34: #{_lambda_.14} parent=31 // pred_check_branch
        %293 = sbr.rel (%p291) target = $region36
      $region35: #{_lambda_.14} parent=31 // pred_region
        %vm294 = vcmask 7168
        %295 = vst.msk [vmem:[#allocation2] sm:$0xff] %vm294, -1e+30
        %296 = vst.msk [vmem:[#allocation2 + $0x8] sm:$0xff] %vm294, -1e+30
        %297 = vst.msk [vmem:[#allocation2 + $0x10] sm:$0xff] %vm294, -1e+30
        %298 = vst.msk [vmem:[#allocation2 + $0x18] sm:$0xff] %vm294, -1e+30
        %299 = vst.msk [vmem:[#allocation2 + $0x20] sm:$0xff] %vm294, -1e+30
        %300 = vst.msk [vmem:[#allocation2 + $0x28] sm:$0xff] %vm294, -1e+30
        %301 = vst.msk [vmem:[#allocation2 + $0x30] sm:$0xff] %vm294, -1e+30
        %302 = vst.msk [vmem:[#allocation2 + $0x38] sm:$0xff] %vm294, -1e+30
        %303 = vst.msk [vmem:[#allocation3] sm:$0xff] %vm294, 0.0
        %304 = vst.msk [vmem:[#allocation3 + $0x8] sm:$0xff] %vm294, 0.0
        %305 = vst.msk [vmem:[#allocation3 + $0x10] sm:$0xff] %vm294, 0.0
        %306 = vst.msk [vmem:[#allocation3 + $0x18] sm:$0xff] %vm294, 0.0
        %307 = vst.msk [vmem:[#allocation3 + $0x20] sm:$0xff] %vm294, 0.0
        %308 = vst.msk [vmem:[#allocation3 + $0x28] sm:$0xff] %vm294, 0.0
        %309 = vst.msk [vmem:[#allocation3 + $0x30] sm:$0xff] %vm294, 0.0
        %310 = vst.msk [vmem:[#allocation3 + $0x38] sm:$0xff] %vm294, 0.0
        %vm311 = vcmask 64512
        %312 = vst.msk [vmem:[#allocation4] sm:$0xff] %vm311, 0.0
        %313 = vst.msk [vmem:[#allocation4 + $0x8] sm:$0xff] %vm311, 0.0
        %314 = vst.msk [vmem:[#allocation4 + $0x10] sm:$0xff] %vm311, 0.0
        %315 = vst.msk [vmem:[#allocation4 + $0x18] sm:$0xff] %vm311, 0.0
        %316 = vst.msk [vmem:[#allocation4 + $0x20] sm:$0xff] %vm311, 0.0
        %317 = vst.msk [vmem:[#allocation4 + $0x28] sm:$0xff] %vm311, 0.0
        %318 = vst.msk [vmem:[#allocation4 + $0x30] sm:$0xff] %vm311, 0.0
        %319 = vst.msk [vmem:[#allocation4 + $0x38] sm:$0xff] %vm311, 0.0
      $region36: #{_lambda_.14} parent=31 // pred_fallthru
        _
      %v320 = vld [vmem:[%s257] sm:$0xf]
      %v321 = vld [vmem:[%s257 + $0x4] sm:$0xf]
      %v322 = vld [vmem:[%s257 + $0x8] sm:$0xf]
      %v323 = vld [vmem:[%s257 + $0xc] sm:$0xf]
      %v324 = vld [vmem:[%s257 + $0x10] sm:$0xf]
      %v325 = vld [vmem:[%s257 + $0x14] sm:$0xf]
      %v326 = vld [vmem:[%s257 + $0x18] sm:$0xf]
      %v327 = vld [vmem:[%s257 + $0x1c] sm:$0xf]
      %v328 = vld [vmem:[%s267] sm:$0xf]
      %v329 = vld [vmem:[%s267 + $0x4] sm:$0xf]
      %v330 = vld [vmem:[%s267 + $0x8] sm:$0xf]
      %v331 = vld [vmem:[%s267 + $0xc] sm:$0xf]
      %v332 = vld [vmem:[%s267 + $0x10] sm:$0xf]
      %v333 = vld [vmem:[%s267 + $0x14] sm:$0xf]
      %v334 = vld [vmem:[%s267 + $0x18] sm:$0xf]
      %v335 = vld [vmem:[%s267 + $0x1c] sm:$0xf]
      %v336 = vld [vmem:[%s277] sm:$0xf]
      %v337 = vld [vmem:[%s277 + $0x4] sm:$0xf]
      %v338 = vld [vmem:[%s277 + $0x8] sm:$0xf]
      %v339 = vld [vmem:[%s277 + $0xc] sm:$0xf]
      %v340 = vld [vmem:[%s277 + $0x10] sm:$0xf]
      %v341 = vld [vmem:[%s277 + $0x14] sm:$0xf]
      %v342 = vld [vmem:[%s277 + $0x18] sm:$0xf]
      %v343 = vld [vmem:[%s277 + $0x1c] sm:$0xf]
      %v346 = vunpack.c.l.b16 %v320
      %v347 = vunpack.c.l.b16 %v321
      %v348 = vpack.c.b16 %v347, %v346
      %v351 = vunpack.c.l.b16 %v328
      %v352 = vunpack.c.l.b16 %v329
      %v353 = vpack.c.b16 %v352, %v351
      %vm354 = vcmask 64512
      %v356 = vsel %vm354, %v348, 0
      %v359 = vsel %vm354, %v353, 0
      %361 = vmatprep.subr.bf16.mxu0 0
      %362 = vmatpush1.bf16.xpose.msra.mxu0 0
      %363 = vmatprep.subr.bf16.mxu0 0
      %364 = vmatpush1.bf16.xpose.msra.mxu0 0
      %365 = vmatprep.subr.bf16.mxu0 0
      %366 = vmatpush1.bf16.xpose.msra.mxu0 0
      %367 = vmatprep.subr.bf16.mxu0 0
      %368 = vmatpush1.bf16.xpose.msra.mxu0 0
      %369 = vmatprep.subr.bf16.mxu0 0
      %370 = vmatpush1.bf16.xpose.msra.mxu0 0
      %371 = vmatprep.subr.bf16.mxu0 0
      %372 = vmatpush1.bf16.xpose.msra.mxu0 0
      %373 = vmatprep.subr.bf16.mxu0 0
      %374 = vmatpush1.bf16.xpose.msra.mxu0 0
      %375 = vmatprep.subr.bf16.mxu0 0
      %376 = vmatpush1.bf16.xpose.msra.mxu0 %v359
      %377 = vmatprep.subr.bf16.mxu0 0
      %378 = vmatpush2.bf16.xpose.msra.mxu0 0
      %379 = vmatprep.subr.bf16.mxu0 0
      %380 = vmatpush2.bf16.xpose.msra.mxu0 0
      %381 = vmatprep.subr.bf16.mxu0 0
      %382 = vmatpush2.bf16.xpose.msra.mxu0 0
      %383 = vmatprep.subr.bf16.mxu0 0
      %384 = vmatpush2.bf16.xpose.msra.mxu0 0
      %385 = vmatprep.subr.bf16.mxu0 0
      %386 = vmatpush2.bf16.xpose.msra.mxu0 0
      %387 = vmatprep.subr.bf16.mxu0 0
      %388 = vmatpush2.bf16.xpose.msra.mxu0 0
      %389 = vmatprep.subr.bf16.mxu0 0
      %390 = vmatpush2.bf16.xpose.msra.mxu0 0
      %391 = vmatprep.subr.bf16.mxu0 0
      %392 = vmatpush2.bf16.xpose.msra.mxu0 0
      %393 = vmatprep.mubr.bf16.mxu0 0
      %394 = vmatmul.mubr.bf16.gmra.mxu0 %v356
      %v395 = vpop.f32.mrf.mxu0
      %v396 = vadd.f32 0.0, %v395
      %v397 = vpop.f32.mrf.mxu0
      %v398 = vpop.f32.mrf.mxu0
      %v399 = vadd.f32 0.0, %v398
      %v400 = vpop.f32.mrf.mxu0
      %401 = vdwg.mxu0
      %v404 = vunpack.c.l.b16 %v322
      %v405 = vunpack.c.l.b16 %v323
      %v406 = vpack.c.b16 %v405, %v404
      %v409 = vunpack.c.l.b16 %v330
      %v410 = vunpack.c.l.b16 %v331
      %v411 = vpack.c.b16 %v410, %v409
      %v413 = vsel %vm354, %v406, 0
      %v416 = vsel %vm354, %v411, 0
      %418 = vmatprep.subr.bf16.mxu0 0
      %419 = vmatpush1.bf16.xpose.msra.mxu0 0
      %420 = vmatprep.subr.bf16.mxu0 0
      %421 = vmatpush1.bf16.xpose.msra.mxu0 0
      %422 = vmatprep.subr.bf16.mxu0 0
      %423 = vmatpush1.bf16.xpose.msra.mxu0 0
      %424 = vmatprep.subr.bf16.mxu0 0
      %425 = vmatpush1.bf16.xpose.msra.mxu0 0
      %426 = vmatprep.subr.bf16.mxu0 0
      %427 = vmatpush1.bf16.xpose.msra.mxu0 0
      %428 = vmatprep.subr.bf16.mxu0 0
      %429 = vmatpush1.bf16.xpose.msra.mxu0 0
      %430 = vmatprep.subr.bf16.mxu0 0
      %431 = vmatpush1.bf16.xpose.msra.mxu0 0
      %432 = vmatprep.subr.bf16.mxu0 0
      %433 = vmatpush1.bf16.xpose.msra.mxu0 %v416
      %434 = vmatprep.subr.bf16.mxu0 0
      %435 = vmatpush2.bf16.xpose.msra.mxu0 0
      %436 = vmatprep.subr.bf16.mxu0 0
      %437 = vmatpush2.bf16.xpose.msra.mxu0 0
      %438 = vmatprep.subr.bf16.mxu0 0
      %439 = vmatpush2.bf16.xpose.msra.mxu0 0
      %440 = vmatprep.subr.bf16.mxu0 0
      %441 = vmatpush2.bf16.xpose.msra.mxu0 0
      %442 = vmatprep.subr.bf16.mxu0 0
      %443 = vmatpush2.bf16.xpose.msra.mxu0 0
      %444 = vmatprep.subr.bf16.mxu0 0
      %445 = vmatpush2.bf16.xpose.msra.mxu0 0
      %446 = vmatprep.subr.bf16.mxu0 0
      %447 = vmatpush2.bf16.xpose.msra.mxu0 0
      %448 = vmatprep.subr.bf16.mxu0 0
      %449 = vmatpush2.bf16.xpose.msra.mxu0 0
      %450 = vmatprep.mubr.bf16.mxu0 0
      %451 = vmatmul.mubr.bf16.gmra.mxu0 %v413
      %v452 = vpop.f32.mrf.mxu0
      %v453 = vadd.f32 0.0, %v452
      %v454 = vpop.f32.mrf.mxu0
      %v455 = vpop.f32.mrf.mxu0
      %v456 = vadd.f32 0.0, %v455
      %v457 = vpop.f32.mrf.mxu0
      %458 = vdwg.mxu0
      %v461 = vunpack.c.l.b16 %v324
      %v462 = vunpack.c.l.b16 %v325
      %v463 = vpack.c.b16 %v462, %v461
      %v466 = vunpack.c.l.b16 %v332
      %v467 = vunpack.c.l.b16 %v333
      %v468 = vpack.c.b16 %v467, %v466
      %v470 = vsel %vm354, %v463, 0
      %v473 = vsel %vm354, %v468, 0
      %475 = vmatprep.subr.bf16.mxu0 0
      %476 = vmatpush1.bf16.xpose.msra.mxu0 0
      %477 = vmatprep.subr.bf16.mxu0 0
      %478 = vmatpush1.bf16.xpose.msra.mxu0 0
      %479 = vmatprep.subr.bf16.mxu0 0
      %480 = vmatpush1.bf16.xpose.msra.mxu0 0
      %481 = vmatprep.subr.bf16.mxu0 0
      %482 = vmatpush1.bf16.xpose.msra.mxu0 0
      %483 = vmatprep.subr.bf16.mxu0 0
      %484 = vmatpush1.bf16.xpose.msra.mxu0 0
      %485 = vmatprep.subr.bf16.mxu0 0
      %486 = vmatpush1.bf16.xpose.msra.mxu0 0
      %487 = vmatprep.subr.bf16.mxu0 0
      %488 = vmatpush1.bf16.xpose.msra.mxu0 0
      %489 = vmatprep.subr.bf16.mxu0 0
      %490 = vmatpush1.bf16.xpose.msra.mxu0 %v473
      %491 = vmatprep.subr.bf16.mxu0 0
      %492 = vmatpush2.bf16.xpose.msra.mxu0 0
      %493 = vmatprep.subr.bf16.mxu0 0
      %494 = vmatpush2.bf16.xpose.msra.mxu0 0
      %495 = vmatprep.subr.bf16.mxu0 0
      %496 = vmatpush2.bf16.xpose.msra.mxu0 0
      %497 = vmatprep.subr.bf16.mxu0 0
      %498 = vmatpush2.bf16.xpose.msra.mxu0 0
      %499 = vmatprep.subr.bf16.mxu0 0
      %500 = vmatpush2.bf16.xpose.msra.mxu0 0
      %501 = vmatprep.subr.bf16.mxu0 0
      %502 = vmatpush2.bf16.xpose.msra.mxu0 0
      %503 = vmatprep.subr.bf16.mxu0 0
      %504 = vmatpush2.bf16.xpose.msra.mxu0 0
      %505 = vmatprep.subr.bf16.mxu0 0
      %506 = vmatpush2.bf16.xpose.msra.mxu0 0
      %507 = vmatprep.mubr.bf16.mxu0 0
      %508 = vmatmul.mubr.bf16.gmra.mxu0 %v470
      %v509 = vpop.f32.mrf.mxu0
      %v510 = vadd.f32 0.0, %v509
      %v511 = vpop.f32.mrf.mxu0
      %v512 = vpop.f32.mrf.mxu0
      %v513 = vadd.f32 0.0, %v512
      %v514 = vpop.f32.mrf.mxu0
      %515 = vdwg.mxu0
      %v518 = vunpack.c.l.b16 %v326
      %v519 = vunpack.c.l.b16 %v327
      %v520 = vpack.c.b16 %v519, %v518
      %v523 = vunpack.c.l.b16 %v334
      %v524 = vunpack.c.l.b16 %v335
      %v525 = vpack.c.b16 %v524, %v523
      %v527 = vsel %vm354, %v520, 0
      %v530 = vsel %vm354, %v525, 0
      %532 = vmatprep.subr.bf16.mxu0 0
      %533 = vmatpush1.bf16.xpose.msra.mxu0 0
      %534 = vmatprep.subr.bf16.mxu0 0
      %535 = vmatpush1.bf16.xpose.msra.mxu0 0
      %536 = vmatprep.subr.bf16.mxu0 0
      %537 = vmatpush1.bf16.xpose.msra.mxu0 0
      %538 = vmatprep.subr.bf16.mxu0 0
      %539 = vmatpush1.bf16.xpose.msra.mxu0 0
      %540 = vmatprep.subr.bf16.mxu0 0
      %541 = vmatpush1.bf16.xpose.msra.mxu0 0
      %542 = vmatprep.subr.bf16.mxu0 0
      %543 = vmatpush1.bf16.xpose.msra.mxu0 0
      %544 = vmatprep.subr.bf16.mxu0 0
      %545 = vmatpush1.bf16.xpose.msra.mxu0 0
      %546 = vmatprep.subr.bf16.mxu0 0
      %547 = vmatpush1.bf16.xpose.msra.mxu0 %v530
      %548 = vmatprep.subr.bf16.mxu0 0
      %549 = vmatpush2.bf16.xpose.msra.mxu0 0
      %550 = vmatprep.subr.bf16.mxu0 0
      %551 = vmatpush2.bf16.xpose.msra.mxu0 0
      %552 = vmatprep.subr.bf16.mxu0 0
      %553 = vmatpush2.bf16.xpose.msra.mxu0 0
      %554 = vmatprep.subr.bf16.mxu0 0
      %555 = vmatpush2.bf16.xpose.msra.mxu0 0
      %556 = vmatprep.subr.bf16.mxu0 0
      %557 = vmatpush2.bf16.xpose.msra.mxu0 0
      %558 = vmatprep.subr.bf16.mxu0 0
      %559 = vmatpush2.bf16.xpose.msra.mxu0 0
      %560 = vmatprep.subr.bf16.mxu0 0
      %561 = vmatpush2.bf16.xpose.msra.mxu0 0
      %562 = vmatprep.subr.bf16.mxu0 0
      %563 = vmatpush2.bf16.xpose.msra.mxu0 0
      %564 = vmatprep.mubr.bf16.mxu0 0
      %565 = vmatmul.mubr.bf16.gmra.mxu0 %v527
      %v566 = vpop.f32.mrf.mxu0
      %v567 = vadd.f32 0.0, %v566
      %v568 = vpop.f32.mrf.mxu0
      %v569 = vpop.f32.mrf.mxu0
      %v570 = vadd.f32 0.0, %v569
      %v571 = vpop.f32.mrf.mxu0
      %572 = vdwg.mxu0
      %v573 = vmul.f32 %v396, 0.35355338
      %v574 = vmul.f32 %v399, 0.35355338
      %v575 = vmul.f32 %v453, 0.35355338
      %v576 = vmul.f32 %v456, 0.35355338
      %v577 = vmul.f32 %v510, 0.35355338
      %v578 = vmul.f32 %v513, 0.35355338
      %v579 = vmul.f32 %v567, 0.35355338
      %v580 = vmul.f32 %v570, 0.35355338
      %s581 = smul.u32 %s21, 16
      %v582 = vlaneseq
      %v583 = vand.u32 %v582, 127
      %v584 = vstv %s581
      %v585 = vadd.s32 %v584, %v583
      %vm586 = vcmp.lt.s32.totalorder %v585, 11
      %v587 = vsel %vm586, %v573, -1e+30
      %v588 = vsel %vm586, %v574, -1e+30
      %v589 = vsel %vm586, %v575, -1e+30
      %v590 = vsel %vm586, %v576, -1e+30
      %v591 = vsel %vm586, %v577, -1e+30
      %v592 = vsel %vm586, %v578, -1e+30
      %v593 = vsel %vm586, %v579, -1e+30
      %v594 = vsel %vm586, %v580, -1e+30
      %v595 = vld [vmem:[#allocation2] sm:$0xff]
      %v596 = vld [vmem:[#allocation2 + $0x8] sm:$0xff]
      %v597 = vld [vmem:[#allocation2 + $0x10] sm:$0xff]
      %v598 = vld [vmem:[#allocation2 + $0x18] sm:$0xff]
      %v599 = vld [vmem:[#allocation2 + $0x20] sm:$0xff]
      %v600 = vld [vmem:[#allocation2 + $0x28] sm:$0xff]
      %v601 = vld [vmem:[#allocation2 + $0x30] sm:$0xff]
      %v602 = vld [vmem:[#allocation2 + $0x38] sm:$0xff]
      %vm603 = vcmask 130048
      %v604 = vsel %vm603, %v587, -inf
      %605 = vmax.xlane.f32.xlu0 %v604
      %v606 = vpop.xlane.xlu0 %605
      %v607 = vsel %vm603, %v588, -inf
      %608 = vmax.xlane.f32.xlu0 %v607
      %v609 = vpop.xlane.xlu0 %608
      %v610 = vsel %vm603, %v589, -inf
      %611 = vmax.xlane.f32.xlu0 %v610
      %v612 = vpop.xlane.xlu0 %611
      %v613 = vsel %vm603, %v590, -inf
      %614 = vmax.xlane.f32.xlu0 %v613
      %v615 = vpop.xlane.xlu0 %614
      %v616 = vsel %vm603, %v591, -inf
      %617 = vmax.xlane.f32.xlu0 %v616
      %v618 = vpop.xlane.xlu0 %617
      %v619 = vsel %vm603, %v592, -inf
      %620 = vmax.xlane.f32.xlu0 %v619
      %v621 = vpop.xlane.xlu0 %620
      %v622 = vsel %vm603, %v593, -inf
      %623 = vmax.xlane.f32.xlu0 %v622
      %v624 = vpop.xlane.xlu0 %623
      %v625 = vsel %vm603, %v594, -inf
      %626 = vmax.xlane.f32.xlu0 %v625
      %v627 = vpop.xlane.xlu0 %626
      %v628 = vmax.f32 %v595, %v606
      %v629 = vmax.f32 %v596, %v609
      %v630 = vmax.f32 %v597, %v612
      %v631 = vmax.f32 %v598, %v615
      %v632 = vmax.f32 %v599, %v618
      %v633 = vmax.f32 %v600, %v621
      %v634 = vmax.f32 %v601, %v624
      %v635 = vmax.f32 %v602, %v627
      %v636 = vsub.f32 %v595, %v628
      %v637 = vsub.f32 %v596, %v629
      %v638 = vsub.f32 %v597, %v630
      %v639 = vsub.f32 %v598, %v631
      %v640 = vsub.f32 %v599, %v632
      %v641 = vsub.f32 %v600, %v633
      %v642 = vsub.f32 %v601, %v634
      %v643 = vsub.f32 %v602, %v635
      %v644 = vmul.f32 %v636, 1.442695
      %v645 = vpow.pop %v644
      %v646 = vmul.f32 %v637, 1.442695
      %v647 = vpow.pop %v646
      %v648 = vmul.f32 %v638, 1.442695
      %v649 = vpow.pop %v648
      %v650 = vmul.f32 %v639, 1.442695
      %v651 = vpow.pop %v650
      %v652 = vmul.f32 %v640, 1.442695
      %v653 = vpow.pop %v652
      %v654 = vmul.f32 %v641, 1.442695
      %v655 = vpow.pop %v654
      %v656 = vmul.f32 %v642, 1.442695
      %v657 = vpow.pop %v656
      %v658 = vmul.f32 %v643, 1.442695
      %v659 = vpow.pop %v658
      %661 = vset.pattern.permute.xlu0 0
      %662 = vperm.xlu0 %661, %v628
      %v663 = vpop.permute.xlu0 %662
      %666 = vset.pattern.permute.xlu0 0
      %667 = vperm.xlu0 %666, %v629
      %v668 = vpop.permute.xlu0 %667
      %671 = vset.pattern.permute.xlu0 0
      %672 = vperm.xlu0 %671, %v630
      %v673 = vpop.permute.xlu0 %672
      %676 = vset.pattern.permute.xlu0 0
      %677 = vperm.xlu0 %676, %v631
      %v678 = vpop.permute.xlu0 %677
      %681 = vset.pattern.permute.xlu0 0
      %682 = vperm.xlu0 %681, %v632
      %v683 = vpop.permute.xlu0 %682
      %686 = vset.pattern.permute.xlu0 0
      %687 = vperm.xlu0 %686, %v633
      %v688 = vpop.permute.xlu0 %687
      %691 = vset.pattern.permute.xlu0 0
      %692 = vperm.xlu0 %691, %v634
      %v693 = vpop.permute.xlu0 %692
      %696 = vset.pattern.permute.xlu0 0
      %697 = vperm.xlu0 %696, %v635
      %v698 = vpop.permute.xlu0 %697
      %v700 = vsub.f32 %v587, %v663
      %v701 = vsub.f32 %v588, %v668
      %v702 = vsub.f32 %v589, %v673
      %v703 = vsub.f32 %v590, %v678
      %v704 = vsub.f32 %v591, %v683
      %v705 = vsub.f32 %v592, %v688
      %v706 = vsub.f32 %v593, %v693
      %v707 = vsub.f32 %v594, %v698
      %v708 = vmul.f32 %v700, 1.442695
      %v709 = vpow.pop %v708
      %v710 = vmul.f32 %v701, 1.442695
      %v711 = vpow.pop %v710
      %v712 = vmul.f32 %v702, 1.442695
      %v713 = vpow.pop %v712
      %v714 = vmul.f32 %v703, 1.442695
      %v715 = vpow.pop %v714
      %v716 = vmul.f32 %v704, 1.442695
      %v717 = vpow.pop %v716
      %v718 = vmul.f32 %v705, 1.442695
      %v719 = vpow.pop %v718
      %v720 = vmul.f32 %v706, 1.442695
      %v721 = vpow.pop %v720
      %v722 = vmul.f32 %v707, 1.442695
      %v723 = vpow.pop %v722
      %v724 = vld [vmem:[#allocation3] sm:$0xff]
      %v725 = vld [vmem:[#allocation3 + $0x8] sm:$0xff]
      %v726 = vld [vmem:[#allocation3 + $0x10] sm:$0xff]
      %v727 = vld [vmem:[#allocation3 + $0x18] sm:$0xff]
      %v728 = vld [vmem:[#allocation3 + $0x20] sm:$0xff]
      %v729 = vld [vmem:[#allocation3 + $0x28] sm:$0xff]
      %v730 = vld [vmem:[#allocation3 + $0x30] sm:$0xff]
      %v731 = vld [vmem:[#allocation3 + $0x38] sm:$0xff]
      %v732 = vmul.f32 %v645, %v724
      %v733 = vmul.f32 %v647, %v725
      %v734 = vmul.f32 %v649, %v726
      %v735 = vmul.f32 %v651, %v727
      %v736 = vmul.f32 %v653, %v728
      %v737 = vmul.f32 %v655, %v729
      %v738 = vmul.f32 %v657, %v730
      %v739 = vmul.f32 %v659, %v731
      %v740 = vsel %vm603, %v709, 0.0
      %741 = vadd.xlane.f32.xlu0 %v740
      %v742 = vpop.xlane.xlu0 %741
      %v743 = vsel %vm603, %v711, 0.0
      %744 = vadd.xlane.f32.xlu0 %v743
      %v745 = vpop.xlane.xlu0 %744
      %v746 = vsel %vm603, %v713, 0.0
      %747 = vadd.xlane.f32.xlu0 %v746
      %v748 = vpop.xlane.xlu0 %747
      %v749 = vsel %vm603, %v715, 0.0
      %750 = vadd.xlane.f32.xlu0 %v749
      %v751 = vpop.xlane.xlu0 %750
      %v752 = vsel %vm603, %v717, 0.0
      %753 = vadd.xlane.f32.xlu0 %v752
      %v754 = vpop.xlane.xlu0 %753
      %v755 = vsel %vm603, %v719, 0.0
      %756 = vadd.xlane.f32.xlu0 %v755
      %v757 = vpop.xlane.xlu0 %756
      %v758 = vsel %vm603, %v721, 0.0
      %759 = vadd.xlane.f32.xlu0 %v758
      %v760 = vpop.xlane.xlu0 %759
      %v761 = vsel %vm603, %v723, 0.0
      %762 = vadd.xlane.f32.xlu0 %v761
      %v763 = vpop.xlane.xlu0 %762
      %v764 = vadd.f32 %v732, %v742
      %v765 = vadd.f32 %v733, %v745
      %v766 = vadd.f32 %v734, %v748
      %v767 = vadd.f32 %v735, %v751
      %v768 = vadd.f32 %v736, %v754
      %v769 = vadd.f32 %v737, %v757
      %v770 = vadd.f32 %v738, %v760
      %v771 = vadd.f32 %v739, %v763
      %vm772 = vcmask 7168
      %773 = vst.msk [vmem:[#allocation3] sm:$0xff] %vm772, %v764
      %774 = vst.msk [vmem:[#allocation3 + $0x8] sm:$0xff] %vm772, %v765
      %775 = vst.msk [vmem:[#allocation3 + $0x10] sm:$0xff] %vm772, %v766
      %776 = vst.msk [vmem:[#allocation3 + $0x18] sm:$0xff] %vm772, %v767
      %777 = vst.msk [vmem:[#allocation3 + $0x20] sm:$0xff] %vm772, %v768
      %778 = vst.msk [vmem:[#allocation3 + $0x28] sm:$0xff] %vm772, %v769
      %779 = vst.msk [vmem:[#allocation3 + $0x30] sm:$0xff] %vm772, %v770
      %780 = vst.msk [vmem:[#allocation3 + $0x38] sm:$0xff] %vm772, %v771
      %v781 = vld [vmem:[#allocation4] sm:$0xff]
      %v782 = vld [vmem:[#allocation4 + $0x8] sm:$0xff]
      %v783 = vld [vmem:[#allocation4 + $0x10] sm:$0xff]
      %v784 = vld [vmem:[#allocation4 + $0x18] sm:$0xff]
      %v785 = vld [vmem:[#allocation4 + $0x20] sm:$0xff]
      %v786 = vld [vmem:[#allocation4 + $0x28] sm:$0xff]
      %v787 = vld [vmem:[#allocation4 + $0x30] sm:$0xff]
      %v788 = vld [vmem:[#allocation4 + $0x38] sm:$0xff]
      %790 = vset.pattern.permute.xlu0 0
      %791 = vperm.xlu0 %790, %v645
      %v792 = vpop.permute.xlu0 %791
      %795 = vset.pattern.permute.xlu0 0
      %796 = vperm.xlu0 %795, %v647
      %v797 = vpop.permute.xlu0 %796
      %800 = vset.pattern.permute.xlu0 0
      %801 = vperm.xlu0 %800, %v649
      %v802 = vpop.permute.xlu0 %801
      %805 = vset.pattern.permute.xlu0 0
      %806 = vperm.xlu0 %805, %v651
      %v807 = vpop.permute.xlu0 %806
      %810 = vset.pattern.permute.xlu0 0
      %811 = vperm.xlu0 %810, %v653
      %v812 = vpop.permute.xlu0 %811
      %815 = vset.pattern.permute.xlu0 0
      %816 = vperm.xlu0 %815, %v655
      %v817 = vpop.permute.xlu0 %816
      %820 = vset.pattern.permute.xlu0 0
      %821 = vperm.xlu0 %820, %v657
      %v822 = vpop.permute.xlu0 %821
      %825 = vset.pattern.permute.xlu0 0
      %826 = vperm.xlu0 %825, %v659
      %v827 = vpop.permute.xlu0 %826
      %v829 = vmul.f32 %v792, %v781
      %v830 = vmul.f32 %v797, %v782
      %v831 = vmul.f32 %v802, %v783
      %v832 = vmul.f32 %v807, %v784
      %v833 = vmul.f32 %v812, %v785
      %v834 = vmul.f32 %v817, %v786
      %v835 = vmul.f32 %v822, %v787
      %v836 = vmul.f32 %v827, %v788
      %v837 = vpack.c.bf16 %v711, %v709
      %v838 = vpack.c.bf16 %v715, %v713
      %v839 = vpack.c.bf16 %v719, %v717
      %v840 = vpack.c.bf16 %v723, %v721
      %v843 = vunpack.c.l.b16 %v336
      %v844 = vunpack.c.l.b16 %v337
      %v845 = vpack.c.b16 %v844, %v843
      %v848 = vsel %vm603, %v837, 0
      %850 = vmatprep.subr.bf16.mxu0 0
      %851 = vmatpush1.bf16.msra.mxu0 0
      %852 = vmatprep.subr.bf16.mxu0 0
      %853 = vmatpush1.bf16.msra.mxu0 0
      %854 = vmatprep.subr.bf16.mxu0 0
      %855 = vmatpush1.bf16.msra.mxu0 0
      %856 = vmatprep.subr.bf16.mxu0 0
      %857 = vmatpush1.bf16.msra.mxu0 0
      %858 = vmatprep.subr.bf16.mxu0 0
      %859 = vmatpush1.bf16.msra.mxu0 0
      %860 = vmatprep.subr.bf16.mxu0 0
      %861 = vmatpush1.bf16.msra.mxu0 0
      %862 = vmatprep.subr.bf16.mxu0 0
      %863 = vmatpush1.bf16.msra.mxu0 0
      %864 = vmatprep.subr.bf16.mxu0 0
      %865 = vmatpush1.bf16.msra.mxu0 %v845
      %866 = vmatprep.subr.bf16.mxu0 0
      %867 = vmatpush2.bf16.msra.mxu0 0
      %868 = vmatprep.subr.bf16.mxu0 0
      %869 = vmatpush2.bf16.msra.mxu0 0
      %870 = vmatprep.subr.bf16.mxu0 0
      %871 = vmatpush2.bf16.msra.mxu0 0
      %872 = vmatprep.subr.bf16.mxu0 0
      %873 = vmatpush2.bf16.msra.mxu0 0
      %874 = vmatprep.subr.bf16.mxu0 0
      %875 = vmatpush2.bf16.msra.mxu0 0
      %876 = vmatprep.subr.bf16.mxu0 0
      %877 = vmatpush2.bf16.msra.mxu0 0
      %878 = vmatprep.subr.bf16.mxu0 0
      %879 = vmatpush2.bf16.msra.mxu0 0
      %880 = vmatprep.subr.bf16.mxu0 0
      %881 = vmatpush2.bf16.msra.mxu0 0
      %882 = vmatprep.mubr.bf16.mxu0 0
      %883 = vmatmul.mubr.bf16.gmra.mxu0 %v848
      %v884 = vpop.f32.mrf.mxu0
      %v885 = vadd.f32 0.0, %v884
      %v886 = vpop.f32.mrf.mxu0
      %v887 = vpop.f32.mrf.mxu0
      %v888 = vadd.f32 0.0, %v887
      %v889 = vpop.f32.mrf.mxu0
      %890 = vdwg.mxu0
      %v893 = vunpack.c.l.b16 %v338
      %v894 = vunpack.c.l.b16 %v339
      %v895 = vpack.c.b16 %v894, %v893
      %v898 = vsel %vm603, %v838, 0
      %900 = vmatprep.subr.bf16.mxu0 0
      %901 = vmatpush1.bf16.msra.mxu0 0
      %902 = vmatprep.subr.bf16.mxu0 0
      %903 = vmatpush1.bf16.msra.mxu0 0
      %904 = vmatprep.subr.bf16.mxu0 0
      %905 = vmatpush1.bf16.msra.mxu0 0
      %906 = vmatprep.subr.bf16.mxu0 0
      %907 = vmatpush1.bf16.msra.mxu0 0
      %908 = vmatprep.subr.bf16.mxu0 0
      %909 = vmatpush1.bf16.msra.mxu0 0
      %910 = vmatprep.subr.bf16.mxu0 0
      %911 = vmatpush1.bf16.msra.mxu0 0
      %912 = vmatprep.subr.bf16.mxu0 0
      %913 = vmatpush1.bf16.msra.mxu0 0
      %914 = vmatprep.subr.bf16.mxu0 0
      %915 = vmatpush1.bf16.msra.mxu0 %v895
      %916 = vmatprep.subr.bf16.mxu0 0
      %917 = vmatpush2.bf16.msra.mxu0 0
      %918 = vmatprep.subr.bf16.mxu0 0
      %919 = vmatpush2.bf16.msra.mxu0 0
      %920 = vmatprep.subr.bf16.mxu0 0
      %921 = vmatpush2.bf16.msra.mxu0 0
      %922 = vmatprep.subr.bf16.mxu0 0
      %923 = vmatpush2.bf16.msra.mxu0 0
      %924 = vmatprep.subr.bf16.mxu0 0
      %925 = vmatpush2.bf16.msra.mxu0 0
      %926 = vmatprep.subr.bf16.mxu0 0
      %927 = vmatpush2.bf16.msra.mxu0 0
      %928 = vmatprep.subr.bf16.mxu0 0
      %929 = vmatpush2.bf16.msra.mxu0 0
      %930 = vmatprep.subr.bf16.mxu0 0
      %931 = vmatpush2.bf16.msra.mxu0 0
      %932 = vmatprep.mubr.bf16.mxu0 0
      %933 = vmatmul.mubr.bf16.gmra.mxu0 %v898
      %v934 = vpop.f32.mrf.mxu0
      %v935 = vadd.f32 0.0, %v934
      %v936 = vpop.f32.mrf.mxu0
      %v937 = vpop.f32.mrf.mxu0
      %v938 = vadd.f32 0.0, %v937
      %v939 = vpop.f32.mrf.mxu0
      %940 = vdwg.mxu0
      %v943 = vunpack.c.l.b16 %v340
      %v944 = vunpack.c.l.b16 %v341
      %v945 = vpack.c.b16 %v944, %v943
      %v948 = vsel %vm603, %v839, 0
      %950 = vmatprep.subr.bf16.mxu0 0
      %951 = vmatpush1.bf16.msra.mxu0 0
      %952 = vmatprep.subr.bf16.mxu0 0
      %953 = vmatpush1.bf16.msra.mxu0 0
      %954 = vmatprep.subr.bf16.mxu0 0
      %955 = vmatpush1.bf16.msra.mxu0 0
      %956 = vmatprep.subr.bf16.mxu0 0
      %957 = vmatpush1.bf16.msra.mxu0 0
      %958 = vmatprep.subr.bf16.mxu0 0
      %959 = vmatpush1.bf16.msra.mxu0 0
      %960 = vmatprep.subr.bf16.mxu0 0
      %961 = vmatpush1.bf16.msra.mxu0 0
      %962 = vmatprep.subr.bf16.mxu0 0
      %963 = vmatpush1.bf16.msra.mxu0 0
      %964 = vmatprep.subr.bf16.mxu0 0
      %965 = vmatpush1.bf16.msra.mxu0 %v945
      %966 = vmatprep.subr.bf16.mxu0 0
      %967 = vmatpush2.bf16.msra.mxu0 0
      %968 = vmatprep.subr.bf16.mxu0 0
      %969 = vmatpush2.bf16.msra.mxu0 0
      %970 = vmatprep.subr.bf16.mxu0 0
      %971 = vmatpush2.bf16.msra.mxu0 0
      %972 = vmatprep.subr.bf16.mxu0 0
      %973 = vmatpush2.bf16.msra.mxu0 0
      %974 = vmatprep.subr.bf16.mxu0 0
      %975 = vmatpush2.bf16.msra.mxu0 0
      %976 = vmatprep.subr.bf16.mxu0 0
      %977 = vmatpush2.bf16.msra.mxu0 0
      %978 = vmatprep.subr.bf16.mxu0 0
      %979 = vmatpush2.bf16.msra.mxu0 0
      %980 = vmatprep.subr.bf16.mxu0 0
      %981 = vmatpush2.bf16.msra.mxu0 0
      %982 = vmatprep.mubr.bf16.mxu0 0
      %983 = vmatmul.mubr.bf16.gmra.mxu0 %v948
      %v984 = vpop.f32.mrf.mxu0
      %v985 = vadd.f32 0.0, %v984
      %v986 = vpop.f32.mrf.mxu0
      %v987 = vpop.f32.mrf.mxu0
      %v988 = vadd.f32 0.0, %v987
      %v989 = vpop.f32.mrf.mxu0
      %990 = vdwg.mxu0
      %v993 = vunpack.c.l.b16 %v342
      %v994 = vunpack.c.l.b16 %v343
      %v995 = vpack.c.b16 %v994, %v993
      %v998 = vsel %vm603, %v840, 0
      %1000 = vmatprep.subr.bf16.mxu0 0
      %1001 = vmatpush1.bf16.msra.mxu0 0
      %1002 = vmatprep.subr.bf16.mxu0 0
      %1003 = vmatpush1.bf16.msra.mxu0 0
      %1004 = vmatprep.subr.bf16.mxu0 0
      %1005 = vmatpush1.bf16.msra.mxu0 0
      %1006 = vmatprep.subr.bf16.mxu0 0
      %1007 = vmatpush1.bf16.msra.mxu0 0
      %1008 = vmatprep.subr.bf16.mxu0 0
      %1009 = vmatpush1.bf16.msra.mxu0 0
      %1010 = vmatprep.subr.bf16.mxu0 0
      %1011 = vmatpush1.bf16.msra.mxu0 0
      %1012 = vmatprep.subr.bf16.mxu0 0
      %1013 = vmatpush1.bf16.msra.mxu0 0
      %1014 = vmatprep.subr.bf16.mxu0 0
      %1015 = vmatpush1.bf16.msra.mxu0 %v995
      %1016 = vmatprep.subr.bf16.mxu0 0
      %1017 = vmatpush2.bf16.msra.mxu0 0
      %1018 = vmatprep.subr.bf16.mxu0 0
      %1019 = vmatpush2.bf16.msra.mxu0 0
      %1020 = vmatprep.subr.bf16.mxu0 0
      %1021 = vmatpush2.bf16.msra.mxu0 0
      %1022 = vmatprep.subr.bf16.mxu0 0
      %1023 = vmatpush2.bf16.msra.mxu0 0
      %1024 = vmatprep.subr.bf16.mxu0 0
      %1025 = vmatpush2.bf16.msra.mxu0 0
      %1026 = vmatprep.subr.bf16.mxu0 0
      %1027 = vmatpush2.bf16.msra.mxu0 0
      %1028 = vmatprep.subr.bf16.mxu0 0
      %1029 = vmatpush2.bf16.msra.mxu0 0
      %1030 = vmatprep.subr.bf16.mxu0 0
      %1031 = vmatpush2.bf16.msra.mxu0 0
      %1032 = vmatprep.mubr.bf16.mxu0 0
      %1033 = vmatmul.mubr.bf16.gmra.mxu0 %v998
      %v1034 = vpop.f32.mrf.mxu0
      %v1035 = vadd.f32 0.0, %v1034
      %v1036 = vpop.f32.mrf.mxu0
      %v1037 = vpop.f32.mrf.mxu0
      %v1038 = vadd.f32 0.0, %v1037
      %v1039 = vpop.f32.mrf.mxu0
      %1040 = vdwg.mxu0
      %v1041 = vadd.f32 %v829, %v885
      %v1042 = vadd.f32 %v830, %v888
      %v1043 = vadd.f32 %v831, %v935
      %v1044 = vadd.f32 %v832, %v938
      %v1045 = vadd.f32 %v833, %v985
      %v1046 = vadd.f32 %v834, %v988
      %v1047 = vadd.f32 %v835, %v1035
      %v1048 = vadd.f32 %v836, %v1038
      %1049 = vst.msk [vmem:[#allocation4] sm:$0xff] %vm354, %v1041
      %1050 = vst.msk [vmem:[#allocation4 + $0x8] sm:$0xff] %vm354, %v1042
      %1051 = vst.msk [vmem:[#allocation4 + $0x10] sm:$0xff] %vm354, %v1043
      %1052 = vst.msk [vmem:[#allocation4 + $0x18] sm:$0xff] %vm354, %v1044
      %1053 = vst.msk [vmem:[#allocation4 + $0x20] sm:$0xff] %vm354, %v1045
      %1054 = vst.msk [vmem:[#allocation4 + $0x28] sm:$0xff] %vm354, %v1046
      %1055 = vst.msk [vmem:[#allocation4 + $0x30] sm:$0xff] %vm354, %v1047
      %1056 = vst.msk [vmem:[#allocation4 + $0x38] sm:$0xff] %vm354, %v1048
      %1057 = vst.msk [vmem:[#allocation2] sm:$0xff] %vm772, %v628
      %1058 = vst.msk [vmem:[#allocation2 + $0x8] sm:$0xff] %vm772, %v629
      %1059 = vst.msk [vmem:[#allocation2 + $0x10] sm:$0xff] %vm772, %v630
      %1060 = vst.msk [vmem:[#allocation2 + $0x18] sm:$0xff] %vm772, %v631
      %1061 = vst.msk [vmem:[#allocation2 + $0x20] sm:$0xff] %vm772, %v632
      %1062 = vst.msk [vmem:[#allocation2 + $0x28] sm:$0xff] %vm772, %v633
      %1063 = vst.msk [vmem:[#allocation2 + $0x30] sm:$0xff] %vm772, %v634
      %1064 = vst.msk [vmem:[#allocation2 + $0x38] sm:$0xff] %vm772, %v635
      // Predicated region
      $region37: #{_lambda_.14} parent=31 // pred_check
        %p1065 = pneg %p290
      $region38: #{_lambda_.14} parent=31 // pred_check_branch
        %1067 = sbr.rel (%p1065) target = $region40
      $region39: #{_lambda_.14} parent=31 // pred_region
        %v1068 = vld [vmem:[#allocation3] sm:$0xff]
        %v1069 = vld [vmem:[#allocation3 + $0x8] sm:$0xff]
        %v1070 = vld [vmem:[#allocation3 + $0x10] sm:$0xff]
        %v1071 = vld [vmem:[#allocation3 + $0x18] sm:$0xff]
        %v1072 = vld [vmem:[#allocation3 + $0x20] sm:$0xff]
        %v1073 = vld [vmem:[#allocation3 + $0x28] sm:$0xff]
        %v1074 = vld [vmem:[#allocation3 + $0x30] sm:$0xff]
        %v1075 = vld [vmem:[#allocation3 + $0x38] sm:$0xff]
        %v1076 = vrcp.pop %v1068
        %v1077 = vrcp.pop %v1069
        %v1078 = vrcp.pop %v1070
        %v1079 = vrcp.pop %v1071
        %v1080 = vrcp.pop %v1072
        %v1081 = vrcp.pop %v1073
        %v1082 = vrcp.pop %v1074
        %v1083 = vrcp.pop %v1075
        %v1084 = vld [vmem:[#allocation4] sm:$0xff]
        %v1085 = vld [vmem:[#allocation4 + $0x8] sm:$0xff]
        %v1086 = vld [vmem:[#allocation4 + $0x10] sm:$0xff]
        %v1087 = vld [vmem:[#allocation4 + $0x18] sm:$0xff]
        %v1088 = vld [vmem:[#allocation4 + $0x20] sm:$0xff]
        %v1089 = vld [vmem:[#allocation4 + $0x28] sm:$0xff]
        %v1090 = vld [vmem:[#allocation4 + $0x30] sm:$0xff]
        %v1091 = vld [vmem:[#allocation4 + $0x38] sm:$0xff]
        %1093 = vset.pattern.permute.xlu0 0
        %1094 = vperm.xlu0 %1093, %v1076
        %v1095 = vpop.permute.xlu0 %1094
        %1098 = vset.pattern.permute.xlu0 0
        %1099 = vperm.xlu0 %1098, %v1077
        %v1100 = vpop.permute.xlu0 %1099
        %1103 = vset.pattern.permute.xlu0 0
        %1104 = vperm.xlu0 %1103, %v1078
        %v1105 = vpop.permute.xlu0 %1104
        %1108 = vset.pattern.permute.xlu0 0
        %1109 = vperm.xlu0 %1108, %v1079
        %v1110 = vpop.permute.xlu0 %1109
        %1113 = vset.pattern.permute.xlu0 0
        %1114 = vperm.xlu0 %1113, %v1080
        %v1115 = vpop.permute.xlu0 %1114
        %1118 = vset.pattern.permute.xlu0 0
        %1119 = vperm.xlu0 %1118, %v1081
        %v1120 = vpop.permute.xlu0 %1119
        %1123 = vset.pattern.permute.xlu0 0
        %1124 = vperm.xlu0 %1123, %v1082
        %v1125 = vpop.permute.xlu0 %1124
        %1128 = vset.pattern.permute.xlu0 0
        %1129 = vperm.xlu0 %1128, %v1083
        %v1130 = vpop.permute.xlu0 %1129
        %v1132 = vmul.f32 %v1084, %v1095
        %v1133 = vmul.f32 %v1085, %v1100
        %v1134 = vmul.f32 %v1086, %v1105
        %v1135 = vmul.f32 %v1087, %v1110
        %v1136 = vmul.f32 %v1088, %v1115
        %v1137 = vmul.f32 %v1089, %v1120
        %v1138 = vmul.f32 %v1090, %v1125
        %v1139 = vmul.f32 %v1091, %v1130
        %v1140 = vpack.c.bf16 %v1133, %v1132
        %v1141 = vpack.c.bf16 %v1135, %v1134
        %v1142 = vpack.c.bf16 %v1137, %v1136
        %v1143 = vpack.c.bf16 %v1139, %v1138
        %v1148 = vunpack.c.l.b16 %v1140
        %v1149 = vunpack.c.h.b16 %v1140
        %v1150 = vunpack.c.l.b16 %v1141
        %v1151 = vunpack.c.h.b16 %v1141
        %v1152 = vunpack.c.l.b16 %v1142
        %v1153 = vunpack.c.h.b16 %v1142
        %v1154 = vunpack.c.l.b16 %v1143
        %v1155 = vunpack.c.h.b16 %v1143
        %v1156 = vpack.c.b16 %v1148, %v1148
        %v1157 = vpack.c.b16 %v1149, %v1149
        %v1158 = vpack.c.b16 %v1150, %v1150
        %v1159 = vpack.c.b16 %v1151, %v1151
        %v1160 = vpack.c.b16 %v1152, %v1152
        %v1161 = vpack.c.b16 %v1153, %v1153
        %v1162 = vpack.c.b16 %v1154, %v1154
        %v1163 = vpack.c.b16 %v1155, %v1155
        %vm1172 = vcmask 60416
        %1173 = vst.msk [vmem:[%s287] sm:$0xf] %vm1172, %v1156
        %1174 = vst.msk [vmem:[%s287 + $0x4] sm:$0xf] %vm1172, %v1157
        %1175 = vst.msk [vmem:[%s287 + $0x8] sm:$0xf] %vm1172, %v1158
        %1176 = vst.msk [vmem:[%s287 + $0xc] sm:$0xf] %vm1172, %v1159
        %1177 = vst.msk [vmem:[%s287 + $0x10] sm:$0xf] %vm1172, %v1160
        %1178 = vst.msk [vmem:[%s287 + $0x14] sm:$0xf] %vm1172, %v1161
        %1179 = vst.msk [vmem:[%s287 + $0x18] sm:$0xf] %vm1172, %v1162
        %1180 = vst.msk [vmem:[%s287 + $0x1c] sm:$0xf] %vm1172, %v1163
      $region40: #{_lambda_.14} parent=31 // pred_fallthru
        _
      %s1181 = smul.u32 2, %s20
      %p1182 = scmp.lt.s32.totalorder %s19, 1
      %s1183 = scalar_select %p1182, %s19, 1
      %p1184 = scmp.lt.s32.totalorder %s1181, 1
      %s1185 = scalar_select %p1184, %s1181, 1
      %s1186 = smul.addr %s1183, 8
      %s1187 = sadd.s32 %s1185, %s1186
      %s1188 = smul.addr %s1187, 4
      %s1189 = scalar_lea.vmem %s3, %s1188
      // Predicated region
      $region41: #{_lambda_.14} parent=31 // pred_check
        %p1190 = pneg %p137
      $region42: #{_lambda_.14} parent=31 // pred_check_branch
        %1192 = sbr.rel (%p1190) target = $region44
      $region43: #{_lambda_.14} parent=31 // pred_region
        %s1193 = smul.u32 2, %s20
      $region44: #{_lambda_.14} parent=31 // pred_fallthru
        _
    $region32: #{_lambda_.14} parent=5 // pred_fallthru
      _
    %p1194 = scmp.le.s32.totalorder 2, %s9
    // Predicated region
    $region45: #{_lambda_.14} parent=5 // pred_check
      %p1195 = pneg %p1194
    $region46: #{_lambda_.14} parent=5 // pred_check_branch
      %1197 = sbr.rel (%p1195) target = $region48
    $region47: #{_lambda_.14} parent=5 // pred_region
      %s1198 = ssub.s32 %s9, 2
      // Predicated region
      $region49: #{_lambda_.14} parent=47 // pred_check
        %p1199 = pneg %p143
      $region50: #{_lambda_.14} parent=47 // pred_check_branch
        %1201 = sbr.rel (%p1199) target = $region52
      $region51: #{_lambda_.14} parent=47 // pred_region
        %s1202 = smul.u32 2, %s23
        %p1203 = scmp.lt.s32.totalorder %s22, 1
        %s1204 = scalar_select %p1203, %s22, 1
        %p1205 = scmp.lt.s32.totalorder %s1202, 1
        %s1206 = scalar_select %p1205, %s1202, 1
        %s1207 = smul.addr %s1204, 8
        %s1208 = sadd.s32 %s1206, %s1207
        %s1209 = smul.addr %s1208, 4
        %s1210 = scalar_lea.vmem %s3, %s1209
      $region52: #{_lambda_.14} parent=47 // pred_fallthru
        _
    $region48: #{_lambda_.14} parent=5 // pred_fallthru
      _
  $region6: #{_lambda_.14} parent=0 // loop_footer
    %s13 = sadd.s32 1, %s9
  $region7: #{_lambda_.14} parent=0 // loop_footer_branch
    %8 = sbr.rel target = $region3
  $region8: #{_lambda_.14} parent=0 // loop_exit
    _

// kernel: _lambda_.23
$region0: #{_lambda_.23}
  #allocation0 [shape = 'u32[]', space=smem, size = 0x4, offset = 0x4, fixed_abs, tag = 'smem constant byte address 0x4 - core index']
  #allocation1 [shape = 'u32[144,128]{1,0:T(1,128)}', space=vmem, size = 0x12000, scoped, tag = 'internal scratch']
  #allocation2 [shape = 'bf16[8,32]{1,0:T(8,128)(2,1)}', space=vmem, size = 0x800, scoped, tag = 'scratch operand']
  %s0 = inlined_call_operand.vmem [shape: f32[8,32], index: 0, kind: input, shape index: {}]
  %s1 = inlined_call_operand.vmem [shape: bf16[32,128], index: 1, kind: input, shape index: {}]
  %s2 = inlined_call_operand.vmem [shape: f32[1,128], index: 2, kind: input, shape index: {}]
  %s3 = inlined_call_operand.vmem [shape: f32[1,32], index: 3, kind: input, shape index: {}]
  %s4 = inlined_call_operand.vmem [shape: f32[1,32], index: 4, kind: input, shape index: {}]
  %s5 = inlined_call_operand.vmem [shape: f32[8,128], index: 5, kind: output, shape index: {}]
  %s6 = sld [smem:[#allocation0]]
  $region34: #{_lambda_.23} parent=0
    _
  %s8 = ssub.s32 1, %s6
  %s9 = scalar_select 0, %s8, %s6
  // Predicated region
  $region2: #{_lambda_.23} parent=0 // pred_check
    _
  $region3: #{_lambda_.23} parent=0 // pred_check_branch
    %11 = sbr.rel (0) target = $region5
  $region4: #{_lambda_.23} parent=0 // pred_region
    _
  $region5: #{_lambda_.23} parent=0 // pred_fallthru
    _
  // Predicated region
  $region6: #{_lambda_.23} parent=0 // pred_check
    _
  $region7: #{_lambda_.23} parent=0 // pred_check_branch
    %13 = sbr.rel (0) target = $region9
  $region8: #{_lambda_.23} parent=0 // pred_region
    _
  $region9: #{_lambda_.23} parent=0 // pred_fallthru
    _
  // Predicated region
  $region10: #{_lambda_.23} parent=0 // pred_check
    _
  $region11: #{_lambda_.23} parent=0 // pred_check_branch
    %15 = sbr.rel (0) target = $region13
  $region12: #{_lambda_.23} parent=0 // pred_region
    _
  $region13: #{_lambda_.23} parent=0 // pred_fallthru
    _
  // Predicated region
  $region14: #{_lambda_.23} parent=0 // pred_check
    _
  $region15: #{_lambda_.23} parent=0 // pred_check_branch
    %17 = sbr.rel (0) target = $region17
  $region16: #{_lambda_.23} parent=0 // pred_region
    _
  $region17: #{_lambda_.23} parent=0 // pred_fallthru
    _
  // Predicated region
  $region18: #{_lambda_.23} parent=0 // pred_check
    _
  $region19: #{_lambda_.23} parent=0 // pred_check_branch
    %19 = sbr.rel (0) target = $region21
  $region20: #{_lambda_.23} parent=0 // pred_region
    _
  $region21: #{_lambda_.23} parent=0 // pred_fallthru
    _
  %p21 = scmp.eq.s32.totalorder 0, 0
  // Predicated region
  $region22: #{_lambda_.23} parent=0 // pred_check
    %p22 = pneg %p21
  $region23: #{_lambda_.23} parent=0 // pred_check_branch
    %24 = sbr.rel (%p22) target = $region25
  $region24: #{_lambda_.23} parent=0 // pred_region
    %v25 = vld [vmem:[%s0] sm:$0xff]
    %vm26 = vcmask 261120
    %v27 = vsel %vm26, %v25, 0.0
    %28 = vadd.xlane.f32.xlu0 %v27
    %v29 = vpop.xlane.xlu0 %28
    %v30 = vrcp.pop 32.0
    %v31 = vmul.f32 %v29, %v30
    %v32 = vsub.f32 %v25, %v31
    %v33 = vmul.f32 %v32, %v32
    %v34 = vsel %vm26, %v33, 0.0
    %35 = vadd.xlane.f32.xlu0 %v34
    %v36 = vpop.xlane.xlu0 %35
    %v37 = vmul.f32 %v36, %v30
    %v38 = vadd.f32 %v37, 1e-05
    %v39 = vrsqrt.pop %v38
    %v40 = vmul.f32 %v32, %v39
    %v41 = vld [vmem:[%s3] sm:$0x1]
    %v43 = vlaneseq
    %v44 = vshrl.u32 %v43, 7
    %v45 = vsub.s32 0, %v44
    %v46 = vrot.slane %v41, %v45
    %v48 = vmul.f32 %v40, %v46
    %v49 = vld [vmem:[%s4] sm:$0x1]
    %v51 = vlaneseq
    %v52 = vshrl.u32 %v51, 7
    %v53 = vsub.s32 0, %v52
    %v54 = vrot.slane %v49, %v53
    %v56 = vadd.f32 %v48, %v54
    %v57 = vpack.c.bf16 %v56, %v56
    %vm58 = vcmask 257024
    %59 = vst.msk [vmem:[#allocation2] sm:$0xf] %vm58, %v57
  $region25: #{_lambda_.23} parent=0 // pred_fallthru
    _
  %v60 = vld [vmem:[#allocation2] sm:$0xf]
  %v61 = vld [vmem:[%s1] sm:$0xf]
  %v62 = vld [vmem:[%s1 + $0x4] sm:$0xf]
  %v63 = vld [vmem:[%s1 + $0x8] sm:$0xf]
  %v64 = vld [vmem:[%s1 + $0xc] sm:$0xf]
  %v65 = vld [vmem:[%s2] sm:$0x1]
  %v67 = vlaneseq
  %v68 = vshrl.u32 %v67, 7
  %v69 = vsub.s32 0, %v68
  %v70 = vrot.slane %v65, %v69
  %v76 = vunpack.c.l.b16 %v61
  %v77 = vunpack.c.l.b16 %v62
  %v78 = vunpack.c.l.b16 %v63
  %v79 = vunpack.c.l.b16 %v64
  %v80 = vpack.c.b16 %v77, %v76
  %v81 = vpack.c.b16 %v79, %v78
  %vm84 = vcmask 261120
  %v86 = vsel %vm84, %v60, 0
  %88 = vmatprep.subr.bf16.mxu0 0
  %89 = vmatpush1.bf16.msra.mxu0 0
  %90 = vmatprep.subr.bf16.mxu0 0
  %91 = vmatpush1.bf16.msra.mxu0 0
  %92 = vmatprep.subr.bf16.mxu0 0
  %93 = vmatpush1.bf16.msra.mxu0 0
  %94 = vmatprep.subr.bf16.mxu0 0
  %95 = vmatpush1.bf16.msra.mxu0 0
  %96 = vmatprep.subr.bf16.mxu0 0
  %97 = vmatpush1.bf16.msra.mxu0 0
  %98 = vmatprep.subr.bf16.mxu0 0
  %99 = vmatpush1.bf16.msra.mxu0 0
  %100 = vmatprep.subr.bf16.mxu0 0
  %101 = vmatpush1.bf16.msra.mxu0 %v81
  %102 = vmatprep.subr.bf16.mxu0 0
  %103 = vmatpush1.bf16.msra.mxu0 %v80
  %104 = vmatprep.subr.bf16.mxu0 0
  %105 = vmatpush2.bf16.msra.mxu0 0
  %106 = vmatprep.subr.bf16.mxu0 0
  %107 = vmatpush2.bf16.msra.mxu0 0
  %108 = vmatprep.subr.bf16.mxu0 0
  %109 = vmatpush2.bf16.msra.mxu0 0
  %110 = vmatprep.subr.bf16.mxu0 0
  %111 = vmatpush2.bf16.msra.mxu0 0
  %112 = vmatprep.subr.bf16.mxu0 0
  %113 = vmatpush2.bf16.msra.mxu0 0
  %114 = vmatprep.subr.bf16.mxu0 0
  %115 = vmatpush2.bf16.msra.mxu0 0
  %116 = vmatprep.subr.bf16.mxu0 0
  %117 = vmatpush2.bf16.msra.mxu0 0
  %118 = vmatprep.subr.bf16.mxu0 0
  %119 = vmatpush2.bf16.msra.mxu0 0
  %120 = vmatprep.mubr.bf16.mxu0 0
  %121 = vmatmul.mubr.bf16.gmra.mxu0 %v86
  %v122 = vpop.f32.mrf.mxu0
  %v123 = vadd.f32 %v70, %v122
  %v124 = vpop.f32.mrf.mxu0
  %v125 = vpop.f32.mrf.mxu0
  %v126 = vpop.f32.mrf.mxu0
  %127 = vdwg.mxu0
  %128 = vst [vmem:[%s5] sm:$0xff] %v123
  // Predicated region
  $region26: #{_lambda_.23} parent=0 // pred_check
    _
  $region27: #{_lambda_.23} parent=0 // pred_check_branch
    %130 = sbr.rel (0) target = $region29
  $region28: #{_lambda_.23} parent=0 // pred_region
    _
  $region29: #{_lambda_.23} parent=0 // pred_fallthru
    _
  // Predicated region
  $region30: #{_lambda_.23} parent=0 // pred_check
    _
  $region31: #{_lambda_.23} parent=0 // pred_check_branch
    %132 = sbr.rel (0) target = $region33
  $region32: #{_lambda_.23} parent=0 // pred_region
    _
  $region33: #{_lambda_.23} parent=0 // pred_fallthru
    _

</llo_original>
